<compile_context>
chip_gen: v6e
topology: v6e:2x2x1
jax: 0.10.0
libtpu: 0.0.40
codegen_flags: <defaults>
</compile_context>

<pallas_src>
import numpy as np
import jax
import jax.numpy as jnp
from jax.experimental import pallas as pl
from jax.experimental.pallas import tpu as pltpu

_HIGHEST = jax.lax.Precision.HIGHEST


# ----------------------------------------------------------------------------
# Fused kernel: dynamic adjacency A3 + graph conv + 1x1 convs + BN + bias + ReLU
# ----------------------------------------------------------------------------
def _make_kernel(N, T, V, C, out_c):
    NT = N * T
    NTV = NT * V
    NCT = N * C * T

    def kernel(params_ref, xl_ref, xvm_ref, xaug_ref, pa_alpha_ref, wz_ref, out_ref):
        # --- scalar folding of linear1/linear2 + convT (1x1, 3->1), pure SMEM work ---
        # params layout: w1(9) | b1(3) | w2(9) | b2(3) | wt(3) | bT(1) | bn1_scale(1)
        wt = [params_ref[24 + k] for k in range(3)]
        a1 = [wt[0] * params_ref[0 + c] + wt[1] * params_ref[3 + c] + wt[2] * params_ref[6 + c]
              for c in range(3)]
        a2 = [wt[0] * params_ref[12 + c] + wt[1] * params_ref[15 + c] + wt[2] * params_ref[18 + c]
              for c in range(3)]
        off = (wt[0] * (params_ref[9] - params_ref[21])
               + wt[1] * (params_ref[10] - params_ref[22])
               + wt[2] * (params_ref[11] - params_ref[23])
               + params_ref[27])
        scale1 = params_ref[28]

        # --- dynamic adjacency A3, vectorized over all N*T frames (lane-blocked layout) ---
        # u1_row[0, nt*V + j] = a1 . x[n,t,j,:] + off   (all biases + bT folded into off)
        u1_row = (a1[0] * xl_ref[0:1, :] + a1[1] * xl_ref[1:2, :]
                  + a1[2] * xl_ref[2:3, :] + off)                                # (1, NTV)
        # u2t[i, nt] = a2 . x[n,t,i,:]
        u2t = a2[0] * xvm_ref[0] + a2[1] * xvm_ref[1] + a2[2] * xvm_ref[2]        # (V, NT)

        # frame lane-expansion matrix, generated in-kernel (iota + compares, no DMA):
        # k2[m, l] = 1 iff lane l belongs to frame m
        m_idx = jax.lax.broadcasted_iota(jnp.int32, (NT, NTV), 0)
        l_idx = jax.lax.broadcasted_iota(jnp.int32, (NT, NTV), 1)
        k2 = jnp.where((l_idx >= m_idx * V) & (l_idx < m_idx * V + V), 1.0, 0.0)

        # u2b[i, nt*V + j] = u2t[i, nt]  (0/1 expansion -> default precision is exact on k2)
        u2b = jnp.dot(u2t, k2, preferred_element_type=jnp.float32)                # (V, NTV)

        # s[i, nt*V + j] == relu(bn1(convT(lin1(x)_j - lin2(x)_i))) == s[n,t,i,j] of the ref
        s = jnp.maximum(scale1 * (u1_row - u2b), 0.0)                             # (V, NTV)

        # temporal |delta| over consecutive frames; pairs crossing a batch boundary
        # (t == T-1) are masked with an in-kernel iota mask (no ssel operand).
        if NT > 1:
            npairs = NT - 1
            width = npairs * V
            d = jnp.abs(s[:, V:] - s[:, :width])                                  # (V, width)
            lane = jax.lax.broadcasted_iota(jnp.int32, (1, width), 1)
            invalid = None
            for n in range(N):
                lo = (n * T + T - 1) * V
                if lo >= width:
                    continue
                blk = (lane >= lo) & (lane < lo + V)
                invalid = blk if invalid is None else (invalid | blk)
            if invalid is not None:
                d = jnp.where(invalid, 0.0, d)

            # sum over frame pairs + mean over batch: log2 tree over lane blocks
            extra = None
            t_acc = d
            f = npairs
            while f > 1:
                h = f // 2
                if f % 2:
                    tail = t_acc[:, 2 * h * V: f * V]
                    extra = tail if extra is None else extra + tail
                t_acc = t_acc[:, : h * V] + t_acc[:, h * V: 2 * h * V]
                f = h
            if extra is not None:
                t_acc = t_acc + extra
            a3 = t_acc * (1.0 / N)                                                # (V, V)
        else:
            a3 = jnp.zeros((V, V), jnp.float32)

        # --- graph conv + (1x1 conv + pool + BN + bias + ReLU) as ONE stacked MXU matmul ---
        adj = pa_alpha_ref[0] + pa_alpha_ref[1] * a3                              # (V, V)
        xa = xaug_ref[...]                                                        # (NCT+1, V) = [x_flat ; ones]
        # feeds only the bn_scale-crushed conv branch -> default precision (review item 4)
        y = jnp.dot(xa[:NCT, :], adj, preferred_element_type=jnp.float32)         # (NCT, V)
        rhs = jnp.concatenate([y, xa], axis=0)                                    # (2*NCT+1, V)
        # validation-critical pool/residual path lives here -> keep HIGHEST on this one only
        out_ref[...] = jnp.maximum(
            jnp.dot(wz_ref[...], rhs, precision=_HIGHEST,
                    preferred_element_type=jnp.float32), 0.0)                     # (N*out_c*T, V)

    return kernel


# ----------------------------------------------------------------------------
# Wrapper (jitted; shape-only constants built with numpy at trace time)
# ----------------------------------------------------------------------------
@jax.jit
def ped_graph_convolution(x, w1, b1, w2, b2, wt, bT, wc, bc, wp, bp, pa, alpha,
                          scale1, bn_scale, pool_scale):
    N, T, V, C = x.shape
    out_c = wc.shape[0]
    f32 = jnp.float32
    NCT = N * C * T
    n_out_rows = N * out_c * T

    # --- input layouts (each a few KB) ---
    x_l = jnp.transpose(x, (3, 0, 1, 2)).reshape(C, N * T * V)    # x[n,t,j,c] -> [c, nTV+tV+j]
    x_vm = jnp.transpose(x, (3, 2, 0, 1)).reshape(C, V, N * T)    # x[n,t,i,c] -> [c, i, nT+t]
    x_flat = x.reshape(NCT, V)                                    # raw torch x.view(N, C*T, V)
    x_aug = jnp.concatenate([x_flat, jnp.ones((1, V), f32)], axis=0)   # ones row feeds the bias column

    # --- flat SMEM parameter vector (linear1/2 + convT folding happens in-kernel) ---
    params = jnp.concatenate([
        jnp.reshape(w1, (-1,)), b1, jnp.reshape(w2, (-1,)), b2, wt,
        jnp.reshape(jnp.asarray(bT, f32), (1,)),
        jnp.reshape(jnp.asarray(scale1, f32), (1,)),
    ]).astype(f32)                                                # (29,)

    pa_alpha = jnp.stack([pa, alpha]).astype(f32)                 # (2, V, V)

    # --- fold 1x1 conv / pool conv / eval-mode BNs / biases into ONE stacked weight ---
    eye_t = np.eye(T, dtype=np.float32)                           # numpy -> compile-time constants
    eye_n = np.eye(N, dtype=np.float32)
    wconv_big = bn_scale * jnp.kron(eye_n, jnp.kron(wc, eye_t))   # (N*out_c*T, N*C*T)
    if C == out_c:
        # module: pool = lambda x: x  (identity residual, no conv/BN)
        wpool_big = jnp.asarray(np.eye(NCT, dtype=np.float32))
        comb_bias = bn_scale * bc
    else:
        wpool_big = pool_scale * jnp.kron(eye_n, jnp.kron(wp, eye_t))
        comb_bias = bn_scale * bc + pool_scale * bp
    bias_col = jnp.reshape(jnp.tile(jnp.repeat(comb_bias, T), N), (n_out_rows, 1))
    wz = jnp.concatenate([wconv_big, wpool_big, bias_col], axis=1).astype(f32)   # (NoT, 2*NCT+1)

    kernel = _make_kernel(N, T, V, C, out_c)
    smem = pl.BlockSpec(memory_space=pltpu.MemorySpace.SMEM)
    vmem = pl.BlockSpec(memory_space=pltpu.MemorySpace.VMEM)

    flops = 2 * (V * (N * T) * (N * T * V)            # lane-expansion matmul
                 + NCT * V * V                        # graph conv
                 + n_out_rows * (2 * NCT + 1) * V)    # fused conv/pool/bias matmul
    bytes_accessed = 4 * (params.size + x_l.size + x_vm.size + x_aug.size
                          + pa_alpha.size + wz.size + n_out_rows * V)

    out_flat = pl.pallas_call(
        kernel,
        out_shape=jax.ShapeDtypeStruct((n_out_rows, V), f32),
        in_specs=[smem] + [vmem] * 5,
        out_specs=vmem,
        cost_estimate=pl.CostEstimate(flops=flops, transcendentals=0,
                                      bytes_accessed=bytes_accessed),
    )(params, x_l, x_vm, x_aug, pa_alpha, wz)

    # torch: relu(z).reshape(N, T, V, out_c) on the contiguous NCHW buffer -> raw reshape.
    return out_flat.reshape(N, T, V, out_c)


# ----------------------------------------------------------------------------
# Pure-JAX reference (mirrors the PyTorch forward, eval-mode BN)
# ----------------------------------------------------------------------------
def reference_forward(x, w1, b1, w2, b2, wt, bT, wc, bc, wp, bp, pa, alpha,
                      scale1, bn_scale, pool_scale):
    N, T, V, C = x.shape
    out_c = wc.shape[0]
    hp = jax.lax.Precision.HIGHEST
    x1 = jnp.matmul(x, w1.T, precision=hp) + b1
    x2 = jnp.matmul(x, w2.T, precision=hp) + b2
    d = x1[:, :, None, :, :] - x2[:, :, :, None, :]                  # (N,T,V,V,C)
    s = jnp.einsum('ntijc,c->ntij', d, wt, precision=hp) + bT
    s = jnp.maximum(s * scale1, 0.0)
    dd = jnp.abs(s[:, 1:] - s[:, :-1])
    a3 = jnp.mean(jnp.sum(dd, axis=1), axis=0)                       # (V, V)
    adj = pa + alpha * a3
    y = jnp.matmul(x.reshape(N, C * T, V), adj, precision=hp).reshape(N, C, T, V)
    z = jnp.einsum('oc,nctv->notv', wc, y, precision=hp) + bc[None, :, None, None]
    z = z * bn_scale
    xr = x.reshape(N, C, T, V)
    if C == out_c:
        p = xr
    else:
        p = jnp.einsum('oc,nctv->notv', wp, xr, precision=hp) + bp[None, :, None, None]
        p = p * pool_scale
    z = jnp.maximum(z + p, 0.0)
    return z.reshape(N, T, V, out_c)


if __name__ == "__main__":
    N, T, V, C, out_c = 2, 8, 17, 3, 8
    eps = 1e-5
    key = jax.random.PRNGKey(0)
    keys = jax.random.split(key, 10)

    x = jax.random.normal(keys[0], (N, T, V, C), dtype=jnp.float32)

    # Deterministic parameter init mirroring the module's __init__ / reset_parameter.
    lim = float(1.0 / (3.0 ** 0.5))                                  # nn.Linear(3,3) default bound
    w1 = jax.random.uniform(keys[1], (3, 3), jnp.float32, -lim, lim)
    b1 = jax.random.uniform(keys[2], (3,), jnp.float32, -lim, lim)
    w2 = jax.random.uniform(keys[3], (3, 3), jnp.float32, -lim, lim)
    b2 = jax.random.uniform(keys[4], (3,), jnp.float32, -lim, lim)
    # convT: Conv2d(3,1,1) kaiming_normal(fan_out=1) -> std sqrt(2); bias = 0
    wt = jax.random.normal(keys[5], (3,), jnp.float32) * jnp.float32(2.0 ** 0.5)
    bT = jnp.float32(0.0)
    # conv2d: conv_branch_init -> std sqrt(2/(out_c*3*1*1)); bias = 0
    wc = jax.random.normal(keys[6], (out_c, 3), jnp.float32) * jnp.float32((2.0 / (out_c * 3)) ** 0.5)
    bc = jnp.zeros((out_c,), jnp.float32)
    # pool conv: kaiming_normal(fan_out=out_c) -> std sqrt(2/out_c); bias = 0
    wp = jax.random.normal(keys[7], (out_c, 3), jnp.float32) * jnp.float32((2.0 / out_c) ** 0.5)
    bp = jnp.zeros((out_c,), jnp.float32)
    # graph parameters: PA = eye / (row_norm + 1e-5) = eye / (1 + 1e-5); alpha = ones
    pa = jnp.eye(V, dtype=jnp.float32) / jnp.float32(1.0 + 1e-5)
    alpha = jnp.ones((V, V), jnp.float32)
    # eval-mode BatchNorm scales (running_mean = 0, running_var = 1, beta = 0)
    scale1 = float(1.0 / (1.0 + eps) ** 0.5)       # convT BN, gamma = 1
    bn_scale = float(1e-6 / (1.0 + eps) ** 0.5)    # self.bn,  gamma = 1e-6
    pool_scale = float(1.0 / (1.0 + eps) ** 0.5)   # pool BN,  gamma = 1

    args = (x, w1, b1, w2, b2, wt, bT, wc, bc, wp, bp, pa, alpha,
            scale1, bn_scale, pool_scale)

    out = ped_graph_convolution(*args)
    out = jax.block_until_ready(out)

    ref = jax.block_until_ready(reference_forward(*args))
    assert out.shape == (N, T, V, out_c), out.shape
    assert jnp.allclose(out, ref, rtol=1e-2, atol=1e-2), float(jnp.max(jnp.abs(out - ref)))

    print("KERNEL_OK")
</pallas_src>

<mosaic_0001>
module attributes {stable_mosaic.version = 11 : i64} {
  func.func @kernel(%arg0: memref<29xf32, #tpu.memory_space<smem>>, %arg1: memref<3x272xf32, #tpu.memory_space<vmem>>, %arg2: memref<3x17x16xf32, #tpu.memory_space<vmem>>, %arg3: memref<49x17xf32, #tpu.memory_space<vmem>>, %arg4: memref<2x17x17xf32, #tpu.memory_space<vmem>>, %arg5: memref<128x97xf32, #tpu.memory_space<vmem>>, %arg6: memref<128x17xf32, #tpu.memory_space<vmem>>) attributes {dimension_semantics = [], scalar_prefetch = 0 : i64, scratch_operands = 0 : i64, tpu.core_type = #tpu.core_type<tc>} {
    %c24 = arith.constant 24 : index
    %0 = memref.load %arg0[%c24] : memref<29xf32, #tpu.memory_space<smem>>
    %c25 = arith.constant 25 : index
    %1 = memref.load %arg0[%c25] : memref<29xf32, #tpu.memory_space<smem>>
    %c26 = arith.constant 26 : index
    %2 = memref.load %arg0[%c26] : memref<29xf32, #tpu.memory_space<smem>>
    %c0 = arith.constant 0 : index
    %3 = memref.load %arg0[%c0] : memref<29xf32, #tpu.memory_space<smem>>
    %4 = arith.mulf %0, %3 : f32
    %c3 = arith.constant 3 : index
    %5 = memref.load %arg0[%c3] : memref<29xf32, #tpu.memory_space<smem>>
    %6 = arith.mulf %1, %5 : f32
    %7 = arith.addf %4, %6 : f32
    %c6 = arith.constant 6 : index
    %8 = memref.load %arg0[%c6] : memref<29xf32, #tpu.memory_space<smem>>
    %9 = arith.mulf %2, %8 : f32
    %10 = arith.addf %7, %9 : f32
    %c1 = arith.constant 1 : index
    %11 = memref.load %arg0[%c1] : memref<29xf32, #tpu.memory_space<smem>>
    %12 = arith.mulf %0, %11 : f32
    %c4 = arith.constant 4 : index
    %13 = memref.load %arg0[%c4] : memref<29xf32, #tpu.memory_space<smem>>
    %14 = arith.mulf %1, %13 : f32
    %15 = arith.addf %12, %14 : f32
    %c7 = arith.constant 7 : index
    %16 = memref.load %arg0[%c7] : memref<29xf32, #tpu.memory_space<smem>>
    %17 = arith.mulf %2, %16 : f32
    %18 = arith.addf %15, %17 : f32
    %c2 = arith.constant 2 : index
    %19 = memref.load %arg0[%c2] : memref<29xf32, #tpu.memory_space<smem>>
    %20 = arith.mulf %0, %19 : f32
    %c5 = arith.constant 5 : index
    %21 = memref.load %arg0[%c5] : memref<29xf32, #tpu.memory_space<smem>>
    %22 = arith.mulf %1, %21 : f32
    %23 = arith.addf %20, %22 : f32
    %c8 = arith.constant 8 : index
    %24 = memref.load %arg0[%c8] : memref<29xf32, #tpu.memory_space<smem>>
    %25 = arith.mulf %2, %24 : f32
    %26 = arith.addf %23, %25 : f32
    %c12 = arith.constant 12 : index
    %27 = memref.load %arg0[%c12] : memref<29xf32, #tpu.memory_space<smem>>
    %28 = arith.mulf %0, %27 : f32
    %c15 = arith.constant 15 : index
    %29 = memref.load %arg0[%c15] : memref<29xf32, #tpu.memory_space<smem>>
    %30 = arith.mulf %1, %29 : f32
    %31 = arith.addf %28, %30 : f32
    %c18 = arith.constant 18 : index
    %32 = memref.load %arg0[%c18] : memref<29xf32, #tpu.memory_space<smem>>
    %33 = arith.mulf %2, %32 : f32
    %34 = arith.addf %31, %33 : f32
    %c13 = arith.constant 13 : index
    %35 = memref.load %arg0[%c13] : memref<29xf32, #tpu.memory_space<smem>>
    %36 = arith.mulf %0, %35 : f32
    %c16 = arith.constant 16 : index
    %37 = memref.load %arg0[%c16] : memref<29xf32, #tpu.memory_space<smem>>
    %38 = arith.mulf %1, %37 : f32
    %39 = arith.addf %36, %38 : f32
    %c19 = arith.constant 19 : index
    %40 = memref.load %arg0[%c19] : memref<29xf32, #tpu.memory_space<smem>>
    %41 = arith.mulf %2, %40 : f32
    %42 = arith.addf %39, %41 : f32
    %c14 = arith.constant 14 : index
    %43 = memref.load %arg0[%c14] : memref<29xf32, #tpu.memory_space<smem>>
    %44 = arith.mulf %0, %43 : f32
    %c17 = arith.constant 17 : index
    %45 = memref.load %arg0[%c17] : memref<29xf32, #tpu.memory_space<smem>>
    %46 = arith.mulf %1, %45 : f32
    %47 = arith.addf %44, %46 : f32
    %c20 = arith.constant 20 : index
    %48 = memref.load %arg0[%c20] : memref<29xf32, #tpu.memory_space<smem>>
    %49 = arith.mulf %2, %48 : f32
    %50 = arith.addf %47, %49 : f32
    %c9 = arith.constant 9 : index
    %51 = memref.load %arg0[%c9] : memref<29xf32, #tpu.memory_space<smem>>
    %c21 = arith.constant 21 : index
    %52 = memref.load %arg0[%c21] : memref<29xf32, #tpu.memory_space<smem>>
    %53 = arith.subf %51, %52 : f32
    %54 = arith.mulf %0, %53 : f32
    %c10 = arith.constant 10 : index
    %55 = memref.load %arg0[%c10] : memref<29xf32, #tpu.memory_space<smem>>
    %c22 = arith.constant 22 : index
    %56 = memref.load %arg0[%c22] : memref<29xf32, #tpu.memory_space<smem>>
    %57 = arith.subf %55, %56 : f32
    %58 = arith.mulf %1, %57 : f32
    %59 = arith.addf %54, %58 : f32
    %c11 = arith.constant 11 : index
    %60 = memref.load %arg0[%c11] : memref<29xf32, #tpu.memory_space<smem>>
    %c23 = arith.constant 23 : index
    %61 = memref.load %arg0[%c23] : memref<29xf32, #tpu.memory_space<smem>>
    %62 = arith.subf %60, %61 : f32
    %63 = arith.mulf %2, %62 : f32
    %64 = arith.addf %59, %63 : f32
    %c27 = arith.constant 27 : index
    %65 = memref.load %arg0[%c27] : memref<29xf32, #tpu.memory_space<smem>>
    %66 = arith.addf %64, %65 : f32
    %c28 = arith.constant 28 : index
    %67 = memref.load %arg0[%c28] : memref<29xf32, #tpu.memory_space<smem>>
    %c0_0 = arith.constant 0 : index
    %c0_1 = arith.constant 0 : index
    %68 = vector.load %arg1[%c0_0, %c0_1] : memref<3x272xf32, #tpu.memory_space<vmem>>, vector<1x272xf32>
    %69 = vector.broadcast %10 : f32 to vector<1x272xf32>
    %70 = arith.mulf %69, %68 : vector<1x272xf32>
    %c1_2 = arith.constant 1 : index
    %c0_3 = arith.constant 0 : index
    %71 = vector.load %arg1[%c1_2, %c0_3] : memref<3x272xf32, #tpu.memory_space<vmem>>, vector<1x272xf32>
    %72 = vector.broadcast %18 : f32 to vector<1x272xf32>
    %73 = arith.mulf %72, %71 : vector<1x272xf32>
    %74 = arith.addf %70, %73 : vector<1x272xf32>
    %c2_4 = arith.constant 2 : index
    %c0_5 = arith.constant 0 : index
    %75 = vector.load %arg1[%c2_4, %c0_5] : memref<3x272xf32, #tpu.memory_space<vmem>>, vector<1x272xf32>
    %76 = vector.broadcast %26 : f32 to vector<1x272xf32>
    %77 = arith.mulf %76, %75 : vector<1x272xf32>
    %78 = arith.addf %74, %77 : vector<1x272xf32>
    %79 = vector.broadcast %66 : f32 to vector<1x272xf32>
    %80 = arith.addf %78, %79 : vector<1x272xf32>
    %c0_6 = arith.constant 0 : index
    %c0_7 = arith.constant 0 : index
    %c0_8 = arith.constant 0 : index
    %81 = vector.load %arg2[%c0_6, %c0_7, %c0_8] : memref<3x17x16xf32, #tpu.memory_space<vmem>>, vector<1x17x16xf32>
    %82 = vector.shape_cast %81 : vector<1x17x16xf32> to vector<17x16xf32>
    %83 = vector.broadcast %34 : f32 to vector<17x16xf32>
    %84 = arith.mulf %83, %82 : vector<17x16xf32>
    %c1_9 = arith.constant 1 : index
    %c0_10 = arith.constant 0 : index
    %c0_11 = arith.constant 0 : index
    %85 = vector.load %arg2[%c1_9, %c0_10, %c0_11] : memref<3x17x16xf32, #tpu.memory_space<vmem>>, vector<1x17x16xf32>
    %86 = vector.shape_cast %85 : vector<1x17x16xf32> to vector<17x16xf32>
    %87 = vector.broadcast %42 : f32 to vector<17x16xf32>
    %88 = arith.mulf %87, %86 : vector<17x16xf32>
    %89 = arith.addf %84, %88 : vector<17x16xf32>
    %c2_12 = arith.constant 2 : index
    %c0_13 = arith.constant 0 : index
    %c0_14 = arith.constant 0 : index
    %90 = vector.load %arg2[%c2_12, %c0_13, %c0_14] : memref<3x17x16xf32, #tpu.memory_space<vmem>>, vector<1x17x16xf32>
    %91 = vector.shape_cast %90 : vector<1x17x16xf32> to vector<17x16xf32>
    %92 = vector.broadcast %50 : f32 to vector<17x16xf32>
    %93 = arith.mulf %92, %91 : vector<17x16xf32>
    %94 = arith.addf %89, %93 : vector<17x16xf32>
    %95 = tpu.iota {dimensions = array<i32: 0>} : vector<16x272xi32>
    %96 = tpu.iota {dimensions = array<i32: 1>} : vector<16x272xi32>
    %c17_i32 = arith.constant 17 : i32
    %97 = vector.broadcast %c17_i32 : i32 to vector<16x272xi32>
    %98 = arith.muli %95, %97 : vector<16x272xi32>
    %99 = arith.cmpi sge, %96, %98 : vector<16x272xi32>
    %c17_i32_15 = arith.constant 17 : i32
    %100 = vector.broadcast %c17_i32_15 : i32 to vector<16x272xi32>
    %101 = arith.muli %95, %100 : vector<16x272xi32>
    %c17_i32_16 = arith.constant 17 : i32
    %102 = vector.broadcast %c17_i32_16 : i32 to vector<16x272xi32>
    %103 = arith.addi %101, %102 : vector<16x272xi32>
    %104 = arith.cmpi slt, %96, %103 : vector<16x272xi32>
    %105 = arith.andi %99, %104 : vector<16x272xi1>
    %cst = arith.constant 1.000000e+00 : f32
    %cst_17 = arith.constant 0.000000e+00 : f32
    %106 = vector.broadcast %cst : f32 to vector<16x272xf32>
    %107 = vector.broadcast %cst_17 : f32 to vector<16x272xf32>
    %108 = arith.select %105, %106, %107 : vector<16x272xi1>, vector<16x272xf32>
    %cst_18 = arith.constant dense<0.000000e+00> : vector<17x272xf32>
    %109 = tpu.matmul %94, %108, %cst_18 {dimension_numbers = #tpu.dot_dimension_numbers<[1], [0], [0], [1], [0, 0, 1, 1], [], []>} : vector<17x16xf32>, vector<16x272xf32>, vector<17x272xf32> -> vector<17x272xf32>
    %110 = vector.broadcast %80 : vector<1x272xf32> to vector<17x272xf32>
    %111 = arith.subf %110, %109 : vector<17x272xf32>
    %112 = vector.broadcast %67 : f32 to vector<17x272xf32>
    %113 = arith.mulf %112, %111 : vector<17x272xf32>
    %cst_19 = arith.constant 0.000000e+00 : f32
    %114 = vector.broadcast %cst_19 : f32 to vector<17x272xf32>
    %115 = arith.maximumf %113, %114 : vector<17x272xf32>
    %116 = vector.extract_strided_slice %115 {offsets = [0, 17], sizes = [17, 255], strides = [1, 1]} : vector<17x272xf32> to vector<17x255xf32>
    %117 = vector.extract_strided_slice %115 {offsets = [0, 0], sizes = [17, 255], strides = [1, 1]} : vector<17x272xf32> to vector<17x255xf32>
    %118 = arith.subf %116, %117 : vector<17x255xf32>
    %119 = math.absf %118 : vector<17x255xf32>
    %120 = tpu.iota {dimensions = array<i32: 1>} : vector<1x255xi32>
    %c119_i32 = arith.constant 119 : i32
    %121 = vector.broadcast %c119_i32 : i32 to vector<1x255xi32>
    %122 = arith.cmpi sge, %120, %121 : vector<1x255xi32>
    %c136_i32 = arith.constant 136 : i32
    %123 = vector.broadcast %c136_i32 : i32 to vector<1x255xi32>
    %124 = arith.cmpi slt, %120, %123 : vector<1x255xi32>
    %125 = arith.andi %122, %124 : vector<1x255xi1>
    %cst_20 = arith.constant 0.000000e+00 : f32
    %126 = vector.shape_cast %125 : vector<1x255xi1> to vector<1x255xi1>
    %127 = vector.broadcast %126 : vector<1x255xi1> to vector<17x255xi1>
    %128 = vector.broadcast %cst_20 : f32 to vector<17x255xf32>
    %129 = arith.select %127, %128, %119 : vector<17x255xi1>, vector<17x255xf32>
    %130 = vector.extract_strided_slice %129 {offsets = [0, 238], sizes = [17, 17], strides = [1, 1]} : vector<17x255xf32> to vector<17x17xf32>
    %131 = vector.extract_strided_slice %129 {offsets = [0, 0], sizes = [17, 119], strides = [1, 1]} : vector<17x255xf32> to vector<17x119xf32>
    %132 = vector.extract_strided_slice %129 {offsets = [0, 119], sizes = [17, 119], strides = [1, 1]} : vector<17x255xf32> to vector<17x119xf32>
    %133 = arith.addf %131, %132 : vector<17x119xf32>
    %134 = vector.extract_strided_slice %133 {offsets = [0, 102], sizes = [17, 17], strides = [1, 1]} : vector<17x119xf32> to vector<17x17xf32>
    %135 = arith.addf %130, %134 : vector<17x17xf32>
    %136 = vector.extract_strided_slice %133 {offsets = [0, 0], sizes = [17, 51], strides = [1, 1]} : vector<17x119xf32> to vector<17x51xf32>
    %137 = vector.extract_strided_slice %133 {offsets = [0, 51], sizes = [17, 51], strides = [1, 1]} : vector<17x119xf32> to vector<17x51xf32>
    %138 = arith.addf %136, %137 : vector<17x51xf32>
    %139 = vector.extract_strided_slice %138 {offsets = [0, 34], sizes = [17, 17], strides = [1, 1]} : vector<17x51xf32> to vector<17x17xf32>
    %140 = arith.addf %135, %139 : vector<17x17xf32>
    %141 = vector.extract_strided_slice %138 {offsets = [0, 0], sizes = [17, 17], strides = [1, 1]} : vector<17x51xf32> to vector<17x17xf32>
    %142 = vector.extract_strided_slice %138 {offsets = [0, 17], sizes = [17, 17], strides = [1, 1]} : vector<17x51xf32> to vector<17x17xf32>
    %143 = arith.addf %141, %142 : vector<17x17xf32>
    %144 = arith.addf %143, %140 : vector<17x17xf32>
    %cst_21 = arith.constant 5.000000e-01 : f32
    %145 = vector.broadcast %cst_21 : f32 to vector<17x17xf32>
    %146 = arith.mulf %144, %145 : vector<17x17xf32>
    %c0_22 = arith.constant 0 : index
    %c0_23 = arith.constant 0 : index
    %c0_24 = arith.constant 0 : index
    %147 = vector.load %arg4[%c0_22, %c0_23, %c0_24] : memref<2x17x17xf32, #tpu.memory_space<vmem>>, vector<1x17x17xf32>
    %148 = vector.shape_cast %147 : vector<1x17x17xf32> to vector<17x17xf32>
    %c1_25 = arith.constant 1 : index
    %c0_26 = arith.constant 0 : index
    %c0_27 = arith.constant 0 : index
    %149 = vector.load %arg4[%c1_25, %c0_26, %c0_27] : memref<2x17x17xf32, #tpu.memory_space<vmem>>, vector<1x17x17xf32>
    %150 = vector.shape_cast %149 : vector<1x17x17xf32> to vector<17x17xf32>
    %151 = arith.mulf %150, %146 : vector<17x17xf32>
    %152 = arith.addf %148, %151 : vector<17x17xf32>
    %c0_28 = arith.constant 0 : index
    %c0_29 = arith.constant 0 : index
    %153 = vector.load %arg3[%c0_28, %c0_29] : memref<49x17xf32, #tpu.memory_space<vmem>>, vector<49x17xf32>
    %154 = vector.extract_strided_slice %153 {offsets = [0, 0], sizes = [48, 17], strides = [1, 1]} : vector<49x17xf32> to vector<48x17xf32>
    %cst_30 = arith.constant dense<0.000000e+00> : vector<48x17xf32>
    %155 = tpu.matmul %154, %152, %cst_30 {dimension_numbers = #tpu.dot_dimension_numbers<[1], [0], [0], [1], [0, 0, 1, 1], [], []>} : vector<48x17xf32>, vector<17x17xf32>, vector<48x17xf32> -> vector<48x17xf32>
    %156 = tpu.concatenate %155, %153 in 0 : vector<48x17xf32>, vector<49x17xf32> -> vector<97x17xf32>
    %c0_31 = arith.constant 0 : index
    %c0_32 = arith.constant 0 : index
    %157 = vector.load %arg5[%c0_31, %c0_32] : memref<128x97xf32, #tpu.memory_space<vmem>>, vector<128x97xf32>
    %cst_33 = arith.constant dense<0.000000e+00> : vector<128x17xf32>
    %158 = tpu.matmul %157, %156, %cst_33 {dimension_numbers = #tpu.dot_dimension_numbers<[1], [0], [0], [1], [0, 0, 1, 1], [], []>, precision = #tpu.contract_precision<fp32>} : vector<128x97xf32>, vector<97x17xf32>, vector<128x17xf32> -> vector<128x17xf32>
    %cst_34 = arith.constant 0.000000e+00 : f32
    %159 = vector.broadcast %cst_34 : f32 to vector<128x17xf32>
    %160 = arith.maximumf %158, %159 : vector<128x17xf32>
    %c0_35 = arith.constant 0 : index
    %c0_36 = arith.constant 0 : index
    %161 = vector.load %arg6[%c0_35, %c0_36] : memref<128x17xf32, #tpu.memory_space<vmem>>, vector<128x17xf32>
    tpu.vector_store %arg6[%c0_35, %c0_36], %160 {strides = array<i32>} : memref<128x17xf32, #tpu.memory_space<vmem>>, vector<128x17xf32>,
    return
  }
}

</mosaic_0001>

<llo_original>
// kernel: tile.5
$region0: #{tile.5}
  %s0 = inlined_call_operand.vmem [shape: f32[8,8], index: 0, kind: input, shape index: {}]
  %s1 = inlined_call_operand.vmem [shape: f32[64], index: 1, kind: output, shape index: {}]
  $region1: #{tile.5} parent=0
    #allocation0 [shape = 'u8[4096]{0}', space=vmem, size = 0x1000, scoped, tag = 'scoped mem for output reshape']
    %v2 = vld [vmem:[%s0] sm:$0x1]
    %vm3 = vcmask 64512
    %4 = vst.msk [vmem:[#allocation0] sm:$0x1] %vm3, %v2
    %s5 = scalar_lea.vmem %s0, 7
    %v6 = vld [vmem:[%s5] sm:$0x1]
    %7 = vrot.lane.b32.xlu0 %v6, 56
    %v8 = vpop.permute.xlu0 %7
    %vm9 = vcmask 523712
    %10 = vst.msk [vmem:[#allocation0] sm:$0x1] %vm9, %v8
    %s11 = scalar_lea.vmem %s0, 6
    %v12 = vld [vmem:[%s11] sm:$0x1]
    %13 = vrot.lane.b32.xlu0 %v12, 48
    %v14 = vpop.permute.xlu0 %13
    %vm15 = vcmask 458112
    %16 = vst.msk [vmem:[#allocation0] sm:$0x1] %vm15, %v14
    %s17 = scalar_lea.vmem %s0, 5
    %v18 = vld [vmem:[%s17] sm:$0x1]
    %19 = vrot.lane.b32.xlu0 %v18, 40
    %v20 = vpop.permute.xlu0 %19
    %vm21 = vcmask 392512
    %22 = vst.msk [vmem:[#allocation0] sm:$0x1] %vm21, %v20
    %s23 = scalar_lea.vmem %s0, 4
    %v24 = vld [vmem:[%s23] sm:$0x1]
    %25 = vrot.lane.b32.xlu0 %v24, 32
    %v26 = vpop.permute.xlu0 %25
    %vm27 = vcmask 326912
    %28 = vst.msk [vmem:[#allocation0] sm:$0x1] %vm27, %v26
    %s29 = scalar_lea.vmem %s0, 3
    %v30 = vld [vmem:[%s29] sm:$0x1]
    %31 = vrot.lane.b32.xlu0 %v30, 24
    %v32 = vpop.permute.xlu0 %31
    %vm33 = vcmask 261312
    %34 = vst.msk [vmem:[#allocation0] sm:$0x1] %vm33, %v32
    %s35 = scalar_lea.vmem %s0, 2
    %v36 = vld [vmem:[%s35] sm:$0x1]
    %37 = vrot.lane.b32.xlu0 %v36, 16
    %v38 = vpop.permute.xlu0 %37
    %vm39 = vcmask 195712
    %40 = vst.msk [vmem:[#allocation0] sm:$0x1] %vm39, %v38
    %s41 = scalar_lea.vmem %s0, 1
    %v42 = vld [vmem:[%s41] sm:$0x1]
    %43 = vrot.lane.b32.xlu0 %v42, 8
    %v44 = vpop.permute.xlu0 %43
    %vm45 = vcmask 130112
    %46 = vst.msk [vmem:[#allocation0] sm:$0x1] %vm45, %v44
    %s48 = sshll.u32 1, 1
    %s49 = ssub.s32 %s48, 1
    %v51 = vld [vmem:[#allocation0] sm:%s49]
    %s52 = sshll.u32 1, 1
    %s53 = ssub.s32 %s52, 1
    %54 = vst [vmem:[%s1] sm:%s53] %v51

// kernel: tile.6
$region0: #{tile.6}
  #allocation0 [shape = 's32[1]{0}', space=sflag, size = 0x4, scoped, tag = 'scoped memory for tile.6']
  %s0 = inlined_call_operand.vmem [shape: f32[64], index: 0, kind: input, shape index: {}]
  %s1 = inlined_call_operand.vmem [shape: f32[2,64], index: 1, kind: output, shape index: {}]
  // Predicated region
  $region2: #{tile.6} parent=0 // pred_check
    _
  $region3: #{tile.6} parent=0 // pred_check_branch
    %3 = sbr.rel (0) target = $region5
  $region4: #{tile.6} parent=0 // pred_region
    _
  $region5: #{tile.6} parent=0 // pred_fallthru
    _
  %v4 = vld [vmem:[%s0] ss:$0 sm:$0xff]
  %5 = vst [vmem:[%s1] sm:$0x3] %v4

// kernel: tile.0
$region0: #{tile.0}
  %s0 = inlined_call_operand.vmem [shape: f32[2,64], index: 0, kind: input, shape index: {}]
  %s1 = inlined_call_operand.vmem [shape: f32[128,1], index: 1, kind: output, shape index: {}]
  $region1: #{tile.0} parent=0
    #allocation0 [shape = 'u8[4096]{0}', space=vmem, size = 0x1000, scoped, tag = 'scoped mem for input reshape']
    %s3 = sshll.u32 1, 2
    %s4 = ssub.s32 %s3, 1
    %v5 = vld [vmem:[%s0] sm:%s4]
    %6 = vst [vmem:[#allocation0] sm:%s4] %v5
    %v7 = vld [vmem:[#allocation0] sm:$0x3]
    %vm8 = vcmask 7168
    %9 = vst.msk [vmem:[%s1] sm:$0x1] %vm8, %v7
    %s10 = scalar_lea.vmem %s1, 63
    %11 = vst.msk [vmem:[%s10] sm:$0x2] %vm8, %v7
    %v12 = vld [vmem:[#allocation0] sm:$0x3]
    %13 = vrot.lane.b32.xlu0 %v12, 127
    %v14 = vpop.permute.xlu0 %13
    %vm15 = vcmask 7168
    %s16 = scalar_lea.vmem %s1, 1
    %17 = vst.msk [vmem:[%s16] sm:$0x1] %vm15, %v14
    %s18 = scalar_lea.vmem %s1, 64
    %19 = vst.msk [vmem:[%s18] sm:$0x2] %vm15, %v14
    %v20 = vld [vmem:[#allocation0] sm:$0x3]
    %21 = vrot.lane.b32.xlu0 %v20, 126
    %v22 = vpop.permute.xlu0 %21
    %vm23 = vcmask 7168
    %s24 = scalar_lea.vmem %s1, 2
    %25 = vst.msk [vmem:[%s24] sm:$0x1] %vm23, %v22
    %s26 = scalar_lea.vmem %s1, 65
    %27 = vst.msk [vmem:[%s26] sm:$0x2] %vm23, %v22
    %v28 = vld [vmem:[#allocation0] sm:$0x3]
    %29 = vrot.lane.b32.xlu0 %v28, 125
    %v30 = vpop.permute.xlu0 %29
    %vm31 = vcmask 7168
    %s32 = scalar_lea.vmem %s1, 3
    %33 = vst.msk [vmem:[%s32] sm:$0x1] %vm31, %v30
    %s34 = scalar_lea.vmem %s1, 66
    %35 = vst.msk [vmem:[%s34] sm:$0x2] %vm31, %v30
    %v36 = vld [vmem:[#allocation0] sm:$0x3]
    %37 = vrot.lane.b32.xlu0 %v36, 124
    %v38 = vpop.permute.xlu0 %37
    %vm39 = vcmask 7168
    %s40 = scalar_lea.vmem %s1, 4
    %41 = vst.msk [vmem:[%s40] sm:$0x1] %vm39, %v38
    %s42 = scalar_lea.vmem %s1, 67
    %43 = vst.msk [vmem:[%s42] sm:$0x2] %vm39, %v38
    %v44 = vld [vmem:[#allocation0] sm:$0x3]
    %45 = vrot.lane.b32.xlu0 %v44, 123
    %v46 = vpop.permute.xlu0 %45
    %vm47 = vcmask 7168
    %s48 = scalar_lea.vmem %s1, 5
    %49 = vst.msk [vmem:[%s48] sm:$0x1] %vm47, %v46
    %s50 = scalar_lea.vmem %s1, 68
    %51 = vst.msk [vmem:[%s50] sm:$0x2] %vm47, %v46
    %v52 = vld [vmem:[#allocation0] sm:$0x3]
    %53 = vrot.lane.b32.xlu0 %v52, 122
    %v54 = vpop.permute.xlu0 %53
    %vm55 = vcmask 7168
    %s56 = scalar_lea.vmem %s1, 6
    %57 = vst.msk [vmem:[%s56] sm:$0x1] %vm55, %v54
    %s58 = scalar_lea.vmem %s1, 69
    %59 = vst.msk [vmem:[%s58] sm:$0x2] %vm55, %v54
    %v60 = vld [vmem:[#allocation0] sm:$0x3]
    %61 = vrot.lane.b32.xlu0 %v60, 121
    %v62 = vpop.permute.xlu0 %61
    %vm63 = vcmask 7168
    %s64 = scalar_lea.vmem %s1, 7
    %65 = vst.msk [vmem:[%s64] sm:$0x1] %vm63, %v62
    %s66 = scalar_lea.vmem %s1, 70
    %67 = vst.msk [vmem:[%s66] sm:$0x2] %vm63, %v62
    %v68 = vld [vmem:[#allocation0] sm:$0x3]
    %69 = vrot.lane.b32.xlu0 %v68, 120
    %v70 = vpop.permute.xlu0 %69
    %vm71 = vcmask 7168
    %s72 = scalar_lea.vmem %s1, 8
    %73 = vst.msk [vmem:[%s72] sm:$0x1] %vm71, %v70
    %s74 = scalar_lea.vmem %s1, 71
    %75 = vst.msk [vmem:[%s74] sm:$0x2] %vm71, %v70
    %v76 = vld [vmem:[#allocation0] sm:$0x3]
    %77 = vrot.lane.b32.xlu0 %v76, 119
    %v78 = vpop.permute.xlu0 %77
    %vm79 = vcmask 7168
    %s80 = scalar_lea.vmem %s1, 9
    %81 = vst.msk [vmem:[%s80] sm:$0x1] %vm79, %v78
    %s82 = scalar_lea.vmem %s1, 72
    %83 = vst.msk [vmem:[%s82] sm:$0x2] %vm79, %v78
    %v84 = vld [vmem:[#allocation0] sm:$0x3]
    %85 = vrot.lane.b32.xlu0 %v84, 118
    %v86 = vpop.permute.xlu0 %85
    %vm87 = vcmask 7168
    %s88 = scalar_lea.vmem %s1, 10
    %89 = vst.msk [vmem:[%s88] sm:$0x1] %vm87, %v86
    %s90 = scalar_lea.vmem %s1, 73
    %91 = vst.msk [vmem:[%s90] sm:$0x2] %vm87, %v86
    %v92 = vld [vmem:[#allocation0] sm:$0x3]
    %93 = vrot.lane.b32.xlu0 %v92, 117
    %v94 = vpop.permute.xlu0 %93
    %vm95 = vcmask 7168
    %s96 = scalar_lea.vmem %s1, 11
    %97 = vst.msk [vmem:[%s96] sm:$0x1] %vm95, %v94
    %s98 = scalar_lea.vmem %s1, 74
    %99 = vst.msk [vmem:[%s98] sm:$0x2] %vm95, %v94
    %v100 = vld [vmem:[#allocation0] sm:$0x3]
    %101 = vrot.lane.b32.xlu0 %v100, 116
    %v102 = vpop.permute.xlu0 %101
    %vm103 = vcmask 7168
    %s104 = scalar_lea.vmem %s1, 12
    %105 = vst.msk [vmem:[%s104] sm:$0x1] %vm103, %v102
    %s106 = scalar_lea.vmem %s1, 75
    %107 = vst.msk [vmem:[%s106] sm:$0x2] %vm103, %v102
    %v108 = vld [vmem:[#allocation0] sm:$0x3]
    %109 = vrot.lane.b32.xlu0 %v108, 115
    %v110 = vpop.permute.xlu0 %109
    %vm111 = vcmask 7168
    %s112 = scalar_lea.vmem %s1, 13
    %113 = vst.msk [vmem:[%s112] sm:$0x1] %vm111, %v110
    %s114 = scalar_lea.vmem %s1, 76
    %115 = vst.msk [vmem:[%s114] sm:$0x2] %vm111, %v110
    %v116 = vld [vmem:[#allocation0] sm:$0x3]
    %117 = vrot.lane.b32.xlu0 %v116, 114
    %v118 = vpop.permute.xlu0 %117
    %vm119 = vcmask 7168
    %s120 = scalar_lea.vmem %s1, 14
    %121 = vst.msk [vmem:[%s120] sm:$0x1] %vm119, %v118
    %s122 = scalar_lea.vmem %s1, 77
    %123 = vst.msk [vmem:[%s122] sm:$0x2] %vm119, %v118
    %v124 = vld [vmem:[#allocation0] sm:$0x3]
    %125 = vrot.lane.b32.xlu0 %v124, 113
    %v126 = vpop.permute.xlu0 %125
    %vm127 = vcmask 7168
    %s128 = scalar_lea.vmem %s1, 15
    %129 = vst.msk [vmem:[%s128] sm:$0x1] %vm127, %v126
    %s130 = scalar_lea.vmem %s1, 78
    %131 = vst.msk [vmem:[%s130] sm:$0x2] %vm127, %v126
    %v132 = vld [vmem:[#allocation0] sm:$0x3]
    %133 = vrot.lane.b32.xlu0 %v132, 112
    %v134 = vpop.permute.xlu0 %133
    %vm135 = vcmask 7168
    %s136 = scalar_lea.vmem %s1, 16
    %137 = vst.msk [vmem:[%s136] sm:$0x1] %vm135, %v134
    %s138 = scalar_lea.vmem %s1, 79
    %139 = vst.msk [vmem:[%s138] sm:$0x2] %vm135, %v134
    %v140 = vld [vmem:[#allocation0] sm:$0x3]
    %141 = vrot.lane.b32.xlu0 %v140, 111
    %v142 = vpop.permute.xlu0 %141
    %vm143 = vcmask 7168
    %s144 = scalar_lea.vmem %s1, 17
    %145 = vst.msk [vmem:[%s144] sm:$0x1] %vm143, %v142
    %s146 = scalar_lea.vmem %s1, 80
    %147 = vst.msk [vmem:[%s146] sm:$0x2] %vm143, %v142
    %v148 = vld [vmem:[#allocation0] sm:$0x3]
    %149 = vrot.lane.b32.xlu0 %v148, 110
    %v150 = vpop.permute.xlu0 %149
    %vm151 = vcmask 7168
    %s152 = scalar_lea.vmem %s1, 18
    %153 = vst.msk [vmem:[%s152] sm:$0x1] %vm151, %v150
    %s154 = scalar_lea.vmem %s1, 81
    %155 = vst.msk [vmem:[%s154] sm:$0x2] %vm151, %v150
    %v156 = vld [vmem:[#allocation0] sm:$0x3]
    %157 = vrot.lane.b32.xlu0 %v156, 109
    %v158 = vpop.permute.xlu0 %157
    %vm159 = vcmask 7168
    %s160 = scalar_lea.vmem %s1, 19
    %161 = vst.msk [vmem:[%s160] sm:$0x1] %vm159, %v158
    %s162 = scalar_lea.vmem %s1, 82
    %163 = vst.msk [vmem:[%s162] sm:$0x2] %vm159, %v158
    %v164 = vld [vmem:[#allocation0] sm:$0x3]
    %165 = vrot.lane.b32.xlu0 %v164, 108
    %v166 = vpop.permute.xlu0 %165
    %vm167 = vcmask 7168
    %s168 = scalar_lea.vmem %s1, 20
    %169 = vst.msk [vmem:[%s168] sm:$0x1] %vm167, %v166
    %s170 = scalar_lea.vmem %s1, 83
    %171 = vst.msk [vmem:[%s170] sm:$0x2] %vm167, %v166
    %v172 = vld [vmem:[#allocation0] sm:$0x3]
    %173 = vrot.lane.b32.xlu0 %v172, 107
    %v174 = vpop.permute.xlu0 %173
    %vm175 = vcmask 7168
    %s176 = scalar_lea.vmem %s1, 21
    %177 = vst.msk [vmem:[%s176] sm:$0x1] %vm175, %v174
    %s178 = scalar_lea.vmem %s1, 84
    %179 = vst.msk [vmem:[%s178] sm:$0x2] %vm175, %v174
    %v180 = vld [vmem:[#allocation0] sm:$0x3]
    %181 = vrot.lane.b32.xlu0 %v180, 106
    %v182 = vpop.permute.xlu0 %181
    %vm183 = vcmask 7168
    %s184 = scalar_lea.vmem %s1, 22
    %185 = vst.msk [vmem:[%s184] sm:$0x1] %vm183, %v182
    %s186 = scalar_lea.vmem %s1, 85
    %187 = vst.msk [vmem:[%s186] sm:$0x2] %vm183, %v182
    %v188 = vld [vmem:[#allocation0] sm:$0x3]
    %189 = vrot.lane.b32.xlu0 %v188, 105
    %v190 = vpop.permute.xlu0 %189
    %vm191 = vcmask 7168
    %s192 = scalar_lea.vmem %s1, 23
    %193 = vst.msk [vmem:[%s192] sm:$0x1] %vm191, %v190
    %s194 = scalar_lea.vmem %s1, 86
    %195 = vst.msk [vmem:[%s194] sm:$0x2] %vm191, %v190
    %v196 = vld [vmem:[#allocation0] sm:$0x3]
    %197 = vrot.lane.b32.xlu0 %v196, 104
    %v198 = vpop.permute.xlu0 %197
    %vm199 = vcmask 7168
    %s200 = scalar_lea.vmem %s1, 24
    %201 = vst.msk [vmem:[%s200] sm:$0x1] %vm199, %v198
    %s202 = scalar_lea.vmem %s1, 87
    %203 = vst.msk [vmem:[%s202] sm:$0x2] %vm199, %v198
    %v204 = vld [vmem:[#allocation0] sm:$0x3]
    %205 = vrot.lane.b32.xlu0 %v204, 103
    %v206 = vpop.permute.xlu0 %205
    %vm207 = vcmask 7168
    %s208 = scalar_lea.vmem %s1, 25
    %209 = vst.msk [vmem:[%s208] sm:$0x1] %vm207, %v206
    %s210 = scalar_lea.vmem %s1, 88
    %211 = vst.msk [vmem:[%s210] sm:$0x2] %vm207, %v206
    %v212 = vld [vmem:[#allocation0] sm:$0x3]
    %213 = vrot.lane.b32.xlu0 %v212, 102
    %v214 = vpop.permute.xlu0 %213
    %vm215 = vcmask 7168
    %s216 = scalar_lea.vmem %s1, 26
    %217 = vst.msk [vmem:[%s216] sm:$0x1] %vm215, %v214
    %s218 = scalar_lea.vmem %s1, 89
    %219 = vst.msk [vmem:[%s218] sm:$0x2] %vm215, %v214
    %v220 = vld [vmem:[#allocation0] sm:$0x3]
    %221 = vrot.lane.b32.xlu0 %v220, 101
    %v222 = vpop.permute.xlu0 %221
    %vm223 = vcmask 7168
    %s224 = scalar_lea.vmem %s1, 27
    %225 = vst.msk [vmem:[%s224] sm:$0x1] %vm223, %v222
    %s226 = scalar_lea.vmem %s1, 90
    %227 = vst.msk [vmem:[%s226] sm:$0x2] %vm223, %v222
    %v228 = vld [vmem:[#allocation0] sm:$0x3]
    %229 = vrot.lane.b32.xlu0 %v228, 100
    %v230 = vpop.permute.xlu0 %229
    %vm231 = vcmask 7168
    %s232 = scalar_lea.vmem %s1, 28
    %233 = vst.msk [vmem:[%s232] sm:$0x1] %vm231, %v230
    %s234 = scalar_lea.vmem %s1, 91
    %235 = vst.msk [vmem:[%s234] sm:$0x2] %vm231, %v230
    %v236 = vld [vmem:[#allocation0] sm:$0x3]
    %237 = vrot.lane.b32.xlu0 %v236, 99
    %v238 = vpop.permute.xlu0 %237
    %vm239 = vcmask 7168
    %s240 = scalar_lea.vmem %s1, 29
    %241 = vst.msk [vmem:[%s240] sm:$0x1] %vm239, %v238
    %s242 = scalar_lea.vmem %s1, 92
    %243 = vst.msk [vmem:[%s242] sm:$0x2] %vm239, %v238
    %v244 = vld [vmem:[#allocation0] sm:$0x3]
    %245 = vrot.lane.b32.xlu0 %v244, 98
    %v246 = vpop.permute.xlu0 %245
    %vm247 = vcmask 7168
    %s248 = scalar_lea.vmem %s1, 30
    %249 = vst.msk [vmem:[%s248] sm:$0x1] %vm247, %v246
    %s250 = scalar_lea.vmem %s1, 93
    %251 = vst.msk [vmem:[%s250] sm:$0x2] %vm247, %v246
    %v252 = vld [vmem:[#allocation0] sm:$0x3]
    %253 = vrot.lane.b32.xlu0 %v252, 97
    %v254 = vpop.permute.xlu0 %253
    %vm255 = vcmask 7168
    %s256 = scalar_lea.vmem %s1, 31
    %257 = vst.msk [vmem:[%s256] sm:$0x1] %vm255, %v254
    %s258 = scalar_lea.vmem %s1, 94
    %259 = vst.msk [vmem:[%s258] sm:$0x2] %vm255, %v254
    %v260 = vld [vmem:[#allocation0] sm:$0x3]
    %261 = vrot.lane.b32.xlu0 %v260, 96
    %v262 = vpop.permute.xlu0 %261
    %vm263 = vcmask 7168
    %s264 = scalar_lea.vmem %s1, 32
    %265 = vst.msk [vmem:[%s264] sm:$0x1] %vm263, %v262
    %s266 = scalar_lea.vmem %s1, 95
    %267 = vst.msk [vmem:[%s266] sm:$0x2] %vm263, %v262
    %v268 = vld [vmem:[#allocation0] sm:$0x3]
    %269 = vrot.lane.b32.xlu0 %v268, 95
    %v270 = vpop.permute.xlu0 %269
    %vm271 = vcmask 7168
    %s272 = scalar_lea.vmem %s1, 33
    %273 = vst.msk [vmem:[%s272] sm:$0x1] %vm271, %v270
    %s274 = scalar_lea.vmem %s1, 96
    %275 = vst.msk [vmem:[%s274] sm:$0x2] %vm271, %v270
    %v276 = vld [vmem:[#allocation0] sm:$0x3]
    %277 = vrot.lane.b32.xlu0 %v276, 94
    %v278 = vpop.permute.xlu0 %277
    %vm279 = vcmask 7168
    %s280 = scalar_lea.vmem %s1, 34
    %281 = vst.msk [vmem:[%s280] sm:$0x1] %vm279, %v278
    %s282 = scalar_lea.vmem %s1, 97
    %283 = vst.msk [vmem:[%s282] sm:$0x2] %vm279, %v278
    %v284 = vld [vmem:[#allocation0] sm:$0x3]
    %285 = vrot.lane.b32.xlu0 %v284, 93
    %v286 = vpop.permute.xlu0 %285
    %vm287 = vcmask 7168
    %s288 = scalar_lea.vmem %s1, 35
    %289 = vst.msk [vmem:[%s288] sm:$0x1] %vm287, %v286
    %s290 = scalar_lea.vmem %s1, 98
    %291 = vst.msk [vmem:[%s290] sm:$0x2] %vm287, %v286
    %v292 = vld [vmem:[#allocation0] sm:$0x3]
    %293 = vrot.lane.b32.xlu0 %v292, 92
    %v294 = vpop.permute.xlu0 %293
    %vm295 = vcmask 7168
    %s296 = scalar_lea.vmem %s1, 36
    %297 = vst.msk [vmem:[%s296] sm:$0x1] %vm295, %v294
    %s298 = scalar_lea.vmem %s1, 99
    %299 = vst.msk [vmem:[%s298] sm:$0x2] %vm295, %v294
    %v300 = vld [vmem:[#allocation0] sm:$0x3]
    %301 = vrot.lane.b32.xlu0 %v300, 91
    %v302 = vpop.permute.xlu0 %301
    %vm303 = vcmask 7168
    %s304 = scalar_lea.vmem %s1, 37
    %305 = vst.msk [vmem:[%s304] sm:$0x1] %vm303, %v302
    %s306 = scalar_lea.vmem %s1, 100
    %307 = vst.msk [vmem:[%s306] sm:$0x2] %vm303, %v302
    %v308 = vld [vmem:[#allocation0] sm:$0x3]
    %309 = vrot.lane.b32.xlu0 %v308, 90
    %v310 = vpop.permute.xlu0 %309
    %vm311 = vcmask 7168
    %s312 = scalar_lea.vmem %s1, 38
    %313 = vst.msk [vmem:[%s312] sm:$0x1] %vm311, %v310
    %s314 = scalar_lea.vmem %s1, 101
    %315 = vst.msk [vmem:[%s314] sm:$0x2] %vm311, %v310
    %v316 = vld [vmem:[#allocation0] sm:$0x3]
    %317 = vrot.lane.b32.xlu0 %v316, 89
    %v318 = vpop.permute.xlu0 %317
    %vm319 = vcmask 7168
    %s320 = scalar_lea.vmem %s1, 39
    %321 = vst.msk [vmem:[%s320] sm:$0x1] %vm319, %v318
    %s322 = scalar_lea.vmem %s1, 102
    %323 = vst.msk [vmem:[%s322] sm:$0x2] %vm319, %v318
    %v324 = vld [vmem:[#allocation0] sm:$0x3]
    %325 = vrot.lane.b32.xlu0 %v324, 88
    %v326 = vpop.permute.xlu0 %325
    %vm327 = vcmask 7168
    %s328 = scalar_lea.vmem %s1, 40
    %329 = vst.msk [vmem:[%s328] sm:$0x1] %vm327, %v326
    %s330 = scalar_lea.vmem %s1, 103
    %331 = vst.msk [vmem:[%s330] sm:$0x2] %vm327, %v326
    %v332 = vld [vmem:[#allocation0] sm:$0x3]
    %333 = vrot.lane.b32.xlu0 %v332, 87
    %v334 = vpop.permute.xlu0 %333
    %vm335 = vcmask 7168
    %s336 = scalar_lea.vmem %s1, 41
    %337 = vst.msk [vmem:[%s336] sm:$0x1] %vm335, %v334
    %s338 = scalar_lea.vmem %s1, 104
    %339 = vst.msk [vmem:[%s338] sm:$0x2] %vm335, %v334
    %v340 = vld [vmem:[#allocation0] sm:$0x3]
    %341 = vrot.lane.b32.xlu0 %v340, 86
    %v342 = vpop.permute.xlu0 %341
    %vm343 = vcmask 7168
    %s344 = scalar_lea.vmem %s1, 42
    %345 = vst.msk [vmem:[%s344] sm:$0x1] %vm343, %v342
    %s346 = scalar_lea.vmem %s1, 105
    %347 = vst.msk [vmem:[%s346] sm:$0x2] %vm343, %v342
    %v348 = vld [vmem:[#allocation0] sm:$0x3]
    %349 = vrot.lane.b32.xlu0 %v348, 85
    %v350 = vpop.permute.xlu0 %349
    %vm351 = vcmask 7168
    %s352 = scalar_lea.vmem %s1, 43
    %353 = vst.msk [vmem:[%s352] sm:$0x1] %vm351, %v350
    %s354 = scalar_lea.vmem %s1, 106
    %355 = vst.msk [vmem:[%s354] sm:$0x2] %vm351, %v350
    %v356 = vld [vmem:[#allocation0] sm:$0x3]
    %357 = vrot.lane.b32.xlu0 %v356, 84
    %v358 = vpop.permute.xlu0 %357
    %vm359 = vcmask 7168
    %s360 = scalar_lea.vmem %s1, 44
    %361 = vst.msk [vmem:[%s360] sm:$0x1] %vm359, %v358
    %s362 = scalar_lea.vmem %s1, 107
    %363 = vst.msk [vmem:[%s362] sm:$0x2] %vm359, %v358
    %v364 = vld [vmem:[#allocation0] sm:$0x3]
    %365 = vrot.lane.b32.xlu0 %v364, 83
    %v366 = vpop.permute.xlu0 %365
    %vm367 = vcmask 7168
    %s368 = scalar_lea.vmem %s1, 45
    %369 = vst.msk [vmem:[%s368] sm:$0x1] %vm367, %v366
    %s370 = scalar_lea.vmem %s1, 108
    %371 = vst.msk [vmem:[%s370] sm:$0x2] %vm367, %v366
    %v372 = vld [vmem:[#allocation0] sm:$0x3]
    %373 = vrot.lane.b32.xlu0 %v372, 82
    %v374 = vpop.permute.xlu0 %373
    %vm375 = vcmask 7168
    %s376 = scalar_lea.vmem %s1, 46
    %377 = vst.msk [vmem:[%s376] sm:$0x1] %vm375, %v374
    %s378 = scalar_lea.vmem %s1, 109
    %379 = vst.msk [vmem:[%s378] sm:$0x2] %vm375, %v374
    %v380 = vld [vmem:[#allocation0] sm:$0x3]
    %381 = vrot.lane.b32.xlu0 %v380, 81
    %v382 = vpop.permute.xlu0 %381
    %vm383 = vcmask 7168
    %s384 = scalar_lea.vmem %s1, 47
    %385 = vst.msk [vmem:[%s384] sm:$0x1] %vm383, %v382
    %s386 = scalar_lea.vmem %s1, 110
    %387 = vst.msk [vmem:[%s386] sm:$0x2] %vm383, %v382
    %v388 = vld [vmem:[#allocation0] sm:$0x3]
    %389 = vrot.lane.b32.xlu0 %v388, 80
    %v390 = vpop.permute.xlu0 %389
    %vm391 = vcmask 7168
    %s392 = scalar_lea.vmem %s1, 48
    %393 = vst.msk [vmem:[%s392] sm:$0x1] %vm391, %v390
    %s394 = scalar_lea.vmem %s1, 111
    %395 = vst.msk [vmem:[%s394] sm:$0x2] %vm391, %v390
    %v396 = vld [vmem:[#allocation0] sm:$0x3]
    %397 = vrot.lane.b32.xlu0 %v396, 79
    %v398 = vpop.permute.xlu0 %397
    %vm399 = vcmask 7168
    %s400 = scalar_lea.vmem %s1, 49
    %401 = vst.msk [vmem:[%s400] sm:$0x1] %vm399, %v398
    %s402 = scalar_lea.vmem %s1, 112
    %403 = vst.msk [vmem:[%s402] sm:$0x2] %vm399, %v398
    %v404 = vld [vmem:[#allocation0] sm:$0x3]
    %405 = vrot.lane.b32.xlu0 %v404, 78
    %v406 = vpop.permute.xlu0 %405
    %vm407 = vcmask 7168
    %s408 = scalar_lea.vmem %s1, 50
    %409 = vst.msk [vmem:[%s408] sm:$0x1] %vm407, %v406
    %s410 = scalar_lea.vmem %s1, 113
    %411 = vst.msk [vmem:[%s410] sm:$0x2] %vm407, %v406
    %v412 = vld [vmem:[#allocation0] sm:$0x3]
    %413 = vrot.lane.b32.xlu0 %v412, 77
    %v414 = vpop.permute.xlu0 %413
    %vm415 = vcmask 7168
    %s416 = scalar_lea.vmem %s1, 51
    %417 = vst.msk [vmem:[%s416] sm:$0x1] %vm415, %v414
    %s418 = scalar_lea.vmem %s1, 114
    %419 = vst.msk [vmem:[%s418] sm:$0x2] %vm415, %v414
    %v420 = vld [vmem:[#allocation0] sm:$0x3]
    %421 = vrot.lane.b32.xlu0 %v420, 76
    %v422 = vpop.permute.xlu0 %421
    %vm423 = vcmask 7168
    %s424 = scalar_lea.vmem %s1, 52
    %425 = vst.msk [vmem:[%s424] sm:$0x1] %vm423, %v422
    %s426 = scalar_lea.vmem %s1, 115
    %427 = vst.msk [vmem:[%s426] sm:$0x2] %vm423, %v422
    %v428 = vld [vmem:[#allocation0] sm:$0x3]
    %429 = vrot.lane.b32.xlu0 %v428, 75
    %v430 = vpop.permute.xlu0 %429
    %vm431 = vcmask 7168
    %s432 = scalar_lea.vmem %s1, 53
    %433 = vst.msk [vmem:[%s432] sm:$0x1] %vm431, %v430
    %s434 = scalar_lea.vmem %s1, 116
    %435 = vst.msk [vmem:[%s434] sm:$0x2] %vm431, %v430
    %v436 = vld [vmem:[#allocation0] sm:$0x3]
    %437 = vrot.lane.b32.xlu0 %v436, 74
    %v438 = vpop.permute.xlu0 %437
    %vm439 = vcmask 7168
    %s440 = scalar_lea.vmem %s1, 54
    %441 = vst.msk [vmem:[%s440] sm:$0x1] %vm439, %v438
    %s442 = scalar_lea.vmem %s1, 117
    %443 = vst.msk [vmem:[%s442] sm:$0x2] %vm439, %v438
    %v444 = vld [vmem:[#allocation0] sm:$0x3]
    %445 = vrot.lane.b32.xlu0 %v444, 73
    %v446 = vpop.permute.xlu0 %445
    %vm447 = vcmask 7168
    %s448 = scalar_lea.vmem %s1, 55
    %449 = vst.msk [vmem:[%s448] sm:$0x1] %vm447, %v446
    %s450 = scalar_lea.vmem %s1, 118
    %451 = vst.msk [vmem:[%s450] sm:$0x2] %vm447, %v446
    %v452 = vld [vmem:[#allocation0] sm:$0x3]
    %453 = vrot.lane.b32.xlu0 %v452, 72
    %v454 = vpop.permute.xlu0 %453
    %vm455 = vcmask 7168
    %s456 = scalar_lea.vmem %s1, 56
    %457 = vst.msk [vmem:[%s456] sm:$0x1] %vm455, %v454
    %s458 = scalar_lea.vmem %s1, 119
    %459 = vst.msk [vmem:[%s458] sm:$0x2] %vm455, %v454
    %v460 = vld [vmem:[#allocation0] sm:$0x3]
    %461 = vrot.lane.b32.xlu0 %v460, 71
    %v462 = vpop.permute.xlu0 %461
    %vm463 = vcmask 7168
    %s464 = scalar_lea.vmem %s1, 57
    %465 = vst.msk [vmem:[%s464] sm:$0x1] %vm463, %v462
    %s466 = scalar_lea.vmem %s1, 120
    %467 = vst.msk [vmem:[%s466] sm:$0x2] %vm463, %v462
    %v468 = vld [vmem:[#allocation0] sm:$0x3]
    %469 = vrot.lane.b32.xlu0 %v468, 70
    %v470 = vpop.permute.xlu0 %469
    %vm471 = vcmask 7168
    %s472 = scalar_lea.vmem %s1, 58
    %473 = vst.msk [vmem:[%s472] sm:$0x1] %vm471, %v470
    %s474 = scalar_lea.vmem %s1, 121
    %475 = vst.msk [vmem:[%s474] sm:$0x2] %vm471, %v470
    %v476 = vld [vmem:[#allocation0] sm:$0x3]
    %477 = vrot.lane.b32.xlu0 %v476, 69
    %v478 = vpop.permute.xlu0 %477
    %vm479 = vcmask 7168
    %s480 = scalar_lea.vmem %s1, 59
    %481 = vst.msk [vmem:[%s480] sm:$0x1] %vm479, %v478
    %s482 = scalar_lea.vmem %s1, 122
    %483 = vst.msk [vmem:[%s482] sm:$0x2] %vm479, %v478
    %v484 = vld [vmem:[#allocation0] sm:$0x3]
    %485 = vrot.lane.b32.xlu0 %v484, 68
    %v486 = vpop.permute.xlu0 %485
    %vm487 = vcmask 7168
    %s488 = scalar_lea.vmem %s1, 60
    %489 = vst.msk [vmem:[%s488] sm:$0x1] %vm487, %v486
    %s490 = scalar_lea.vmem %s1, 123
    %491 = vst.msk [vmem:[%s490] sm:$0x2] %vm487, %v486
    %v492 = vld [vmem:[#allocation0] sm:$0x3]
    %493 = vrot.lane.b32.xlu0 %v492, 67
    %v494 = vpop.permute.xlu0 %493
    %vm495 = vcmask 7168
    %s496 = scalar_lea.vmem %s1, 61
    %497 = vst.msk [vmem:[%s496] sm:$0x1] %vm495, %v494
    %s498 = scalar_lea.vmem %s1, 124
    %499 = vst.msk [vmem:[%s498] sm:$0x2] %vm495, %v494
    %v500 = vld [vmem:[#allocation0] sm:$0x3]
    %501 = vrot.lane.b32.xlu0 %v500, 66
    %v502 = vpop.permute.xlu0 %501
    %vm503 = vcmask 7168
    %s504 = scalar_lea.vmem %s1, 62
    %505 = vst.msk [vmem:[%s504] sm:$0x1] %vm503, %v502
    %s506 = scalar_lea.vmem %s1, 125
    %507 = vst.msk [vmem:[%s506] sm:$0x2] %vm503, %v502
    %v508 = vld [vmem:[#allocation0] sm:$0x3]
    %509 = vrot.lane.b32.xlu0 %v508, 65
    %v510 = vpop.permute.xlu0 %509
    %vm511 = vcmask 7168
    %s512 = scalar_lea.vmem %s1, 63
    %513 = vst.msk [vmem:[%s512] sm:$0x1] %vm511, %v510
    %s514 = scalar_lea.vmem %s1, 126
    %515 = vst.msk [vmem:[%s514] sm:$0x2] %vm511, %v510

// kernel: ped_graph_convolution.1
$region0: #{ped_graph_convolution.1}
  #allocation0 [shape = 'u32[]', space=smem, size = 0x4, offset = 0x4, fixed_abs, tag = 'smem constant byte address 0x4 - core index']
  #allocation1 [shape = 'u32[144,128]{1,0:T(1,128)}', space=vmem, size = 0x12000, scoped, tag = 'internal scratch']
  %s0 = inlined_call_operand.vmem [shape: f32[29], index: 0, kind: input, shape index: {}]
  %s1 = inlined_call_operand.vmem [shape: f32[3,272], index: 1, kind: input, shape index: {}]
  %s2 = inlined_call_operand.vmem [shape: f32[3,17,16], index: 2, kind: input, shape index: {}]
  %s3 = inlined_call_operand.vmem [shape: f32[49,17], index: 3, kind: input, shape index: {}]
  %s4 = inlined_call_operand.vmem [shape: f32[2,17,17], index: 4, kind: input, shape index: {}]
  %s5 = inlined_call_operand.vmem [shape: f32[128,97], index: 5, kind: input, shape index: {}]
  %s6 = inlined_call_operand.vmem [shape: f32[128,17], index: 6, kind: output, shape index: {}]
  %s7 = sld [smem:[#allocation0]]
  $region38: #{ped_graph_convolution.1} parent=0
    _
  %s9 = ssub.s32 1, %s7
  %s10 = scalar_select 0, %s9, %s7
  $region1: #{ped_graph_convolution.1} parent=0
    #allocation2 [shape = 'u8[512]{0}', space=smem, size = 0x200, scoped, tag = 'input window, operand 0, single buffered']
    #allocation3 [shape = 's32[1]{0}', space=sflag, size = 0x4, scoped, tag = 'scoped memory for ped_graph_convolution.1']
    %11 = vsyncpa [#allocation3], 0
    // Predicated region
    $region2: #{ped_graph_convolution.1} parent=1 // pred_check
      _
    $region3: #{ped_graph_convolution.1} parent=1 // pred_check_branch
      %13 = sbr.rel (0) target = $region5
    $region4: #{ped_graph_convolution.1} parent=1 // pred_region
      %s15 = ssub.s32 16, 16
      %16 = vsyncadd [#allocation3], %s15
      %s18 = sshll.u32 %s0, 4
      %s19 = int_to_ptr.vmem [resolvable:$true] %s18
      %21 = dma.vmem_to_smem %s19, 16, [#allocation2], [#allocation3]
    $region5: #{ped_graph_convolution.1} parent=1 // pred_fallthru
      _
    // Predicated region
    $region6: #{ped_graph_convolution.1} parent=1 // pred_check
      _
    $region7: #{ped_graph_convolution.1} parent=1 // pred_check_branch
      %23 = sbr.rel (0) target = $region9
    $region8: #{ped_graph_convolution.1} parent=1 // pred_region
      _
    $region9: #{ped_graph_convolution.1} parent=1 // pred_fallthru
      _
    // Predicated region
    $region10: #{ped_graph_convolution.1} parent=1 // pred_check
      _
    $region11: #{ped_graph_convolution.1} parent=1 // pred_check_branch
      %25 = sbr.rel (0) target = $region13
    $region12: #{ped_graph_convolution.1} parent=1 // pred_region
      _
    $region13: #{ped_graph_convolution.1} parent=1 // pred_fallthru
      _
    // Predicated region
    $region14: #{ped_graph_convolution.1} parent=1 // pred_check
      _
    $region15: #{ped_graph_convolution.1} parent=1 // pred_check_branch
      %27 = sbr.rel (0) target = $region17
    $region16: #{ped_graph_convolution.1} parent=1 // pred_region
      _
    $region17: #{ped_graph_convolution.1} parent=1 // pred_fallthru
      _
    // Predicated region
    $region18: #{ped_graph_convolution.1} parent=1 // pred_check
      _
    $region19: #{ped_graph_convolution.1} parent=1 // pred_check_branch
      %29 = sbr.rel (0) target = $region21
    $region20: #{ped_graph_convolution.1} parent=1 // pred_region
      _
    $region21: #{ped_graph_convolution.1} parent=1 // pred_fallthru
      _
    // Predicated region
    $region22: #{ped_graph_convolution.1} parent=1 // pred_check
      _
    $region23: #{ped_graph_convolution.1} parent=1 // pred_check_branch
      %31 = sbr.rel (0) target = $region25
    $region24: #{ped_graph_convolution.1} parent=1 // pred_region
      _
    $region25: #{ped_graph_convolution.1} parent=1 // pred_fallthru
      _
    // Predicated region
    $region26: #{ped_graph_convolution.1} parent=1 // pred_check
      _
    $region27: #{ped_graph_convolution.1} parent=1 // pred_check_branch
      %33 = sbr.rel (0) target = $region29
    $region28: #{ped_graph_convolution.1} parent=1 // pred_region
      %34 = dma.done [#allocation3], 16
    $region29: #{ped_graph_convolution.1} parent=1 // pred_fallthru
      _
    %35 = sfence
    %s36 = sld [smem:[#allocation2 + $0x18]]
    %s37 = sld [smem:[#allocation2 + $0x19]]
    %s38 = sld [smem:[#allocation2 + $0x1a]]
    %s39 = sld [smem:[#allocation2]]
    %s40 = smul.f32 %s36, %s39
    %s41 = sld [smem:[#allocation2 + $0x3]]
    %s42 = smul.f32 %s37, %s41
    %s43 = sadd.f32 %s40, %s42
    %s44 = sld [smem:[#allocation2 + $0x6]]
    %s45 = smul.f32 %s38, %s44
    %s46 = sadd.f32 %s43, %s45
    %s47 = sld [smem:[#allocation2 + $0x1]]
    %s48 = smul.f32 %s36, %s47
    %s49 = sld [smem:[#allocation2 + $0x4]]
    %s50 = smul.f32 %s37, %s49
    %s51 = sadd.f32 %s48, %s50
    %s52 = sld [smem:[#allocation2 + $0x7]]
    %s53 = smul.f32 %s38, %s52
    %s54 = sadd.f32 %s51, %s53
    %s55 = sld [smem:[#allocation2 + $0x2]]
    %s56 = smul.f32 %s36, %s55
    %s57 = sld [smem:[#allocation2 + $0x5]]
    %s58 = smul.f32 %s37, %s57
    %s59 = sadd.f32 %s56, %s58
    %s60 = sld [smem:[#allocation2 + $0x8]]
    %s61 = smul.f32 %s38, %s60
    %s62 = sadd.f32 %s59, %s61
    %s63 = sld [smem:[#allocation2 + $0xc]]
    %s64 = smul.f32 %s36, %s63
    %s65 = sld [smem:[#allocation2 + $0xf]]
    %s66 = smul.f32 %s37, %s65
    %s67 = sadd.f32 %s64, %s66
    %s68 = sld [smem:[#allocation2 + $0x12]]
    %s69 = smul.f32 %s38, %s68
    %s70 = sadd.f32 %s67, %s69
    %s71 = sld [smem:[#allocation2 + $0xd]]
    %s72 = smul.f32 %s36, %s71
    %s73 = sld [smem:[#allocation2 + $0x10]]
    %s74 = smul.f32 %s37, %s73
    %s75 = sadd.f32 %s72, %s74
    %s76 = sld [smem:[#allocation2 + $0x13]]
    %s77 = smul.f32 %s38, %s76
    %s78 = sadd.f32 %s75, %s77
    %s79 = sld [smem:[#allocation2 + $0xe]]
    %s80 = smul.f32 %s36, %s79
    %s81 = sld [smem:[#allocation2 + $0x11]]
    %s82 = smul.f32 %s37, %s81
    %s83 = sadd.f32 %s80, %s82
    %s84 = sld [smem:[#allocation2 + $0x14]]
    %s85 = smul.f32 %s38, %s84
    %s86 = sadd.f32 %s83, %s85
    %s87 = sld [smem:[#allocation2 + $0x9]]
    %s88 = sld [smem:[#allocation2 + $0x15]]
    %s89 = ssub.f32 %s87, %s88
    %s90 = smul.f32 %s36, %s89
    %s91 = sld [smem:[#allocation2 + $0xa]]
    %s92 = sld [smem:[#allocation2 + $0x16]]
    %s93 = ssub.f32 %s91, %s92
    %s94 = smul.f32 %s37, %s93
    %s95 = sadd.f32 %s90, %s94
    %s96 = sld [smem:[#allocation2 + $0xb]]
    %s97 = sld [smem:[#allocation2 + $0x17]]
    %s98 = ssub.f32 %s96, %s97
    %s99 = smul.f32 %s38, %s98
    %s100 = sadd.f32 %s95, %s99
    %s101 = sld [smem:[#allocation2 + $0x1b]]
    %s102 = sadd.f32 %s100, %s101
    %s103 = sld [smem:[#allocation2 + $0x1c]]
    %v104 = vld [vmem:[%s1] ss:$4 sm:$0x7]
    %v105 = vstv %s46
    %v106 = vmul.f32 %v105, %v104
    %s107 = scalar_lea.vmem %s1, 1
    %v108 = vld [vmem:[%s107] ss:$4 sm:$0x7]
    %v109 = vstv %s54
    %v110 = vmul.f32 %v109, %v108
    %v111 = vadd.f32 %v106, %v110
    %s112 = scalar_lea.vmem %s1, 2
    %v113 = vld [vmem:[%s112] ss:$4 sm:$0x7]
    %v114 = vstv %s62
    %v115 = vmul.f32 %v114, %v113
    %v116 = vadd.f32 %v111, %v115
    %v117 = vstv %s102
    %v118 = vadd.f32 %v116, %v117
    %v119 = vld [vmem:[%s2] sm:$0xff]
    %v120 = vld [vmem:[%s2 + $0x8] sm:$0xff]
    %v121 = vld [vmem:[%s2 + $0x10] sm:$0x1]
    %v122 = vstv %s70
    %v123 = vmul.f32 %v122, %v119
    %v124 = vmul.f32 %v122, %v120
    %v125 = vmul.f32 %v122, %v121
    %s126 = scalar_lea.vmem %s2, 24
    %v127 = vld [vmem:[%s126] sm:$0xff]
    %v128 = vld [vmem:[%s126 + $0x8] sm:$0xff]
    %v129 = vld [vmem:[%s126 + $0x10] sm:$0x1]
    %v130 = vstv %s78
    %v131 = vmul.f32 %v130, %v127
    %v132 = vmul.f32 %v130, %v128
    %v133 = vmul.f32 %v130, %v129
    %v134 = vadd.f32 %v123, %v131
    %v135 = vadd.f32 %v124, %v132
    %v136 = vadd.f32 %v125, %v133
    %s137 = scalar_lea.vmem %s2, 48
    %v138 = vld [vmem:[%s137] sm:$0xff]
    %v139 = vld [vmem:[%s137 + $0x8] sm:$0xff]
    %v140 = vld [vmem:[%s137 + $0x10] sm:$0x1]
    %v141 = vstv %s86
    %v142 = vmul.f32 %v141, %v138
    %v143 = vmul.f32 %v141, %v139
    %v144 = vmul.f32 %v141, %v140
    %v145 = vadd.f32 %v134, %v142
    %v146 = vadd.f32 %v135, %v143
    %v147 = vadd.f32 %v136, %v144
    %v148 = vlaneseq
    %v149 = vshrl.u32 %v148, 7
    %v150 = vadd.s32 %v149, 8
    %v151 = vlaneseq
    %v152 = vand.u32 %v151, 127
    %v153 = vadd.s32 %v152, 128
    %v154 = vadd.s32 %v152, 256
    %v155 = vmul.u32 %v149, 17
    %v156 = vmul.u32 %v150, 17
    %vm157 = vcmp.ge.s32.totalorder %v152, %v155
    %vm158 = vcmp.ge.s32.totalorder %v153, %v155
    %vm159 = vcmp.ge.s32.totalorder %v154, %v155
    %vm160 = vcmp.ge.s32.totalorder %v152, %v156
    %vm161 = vcmp.ge.s32.totalorder %v153, %v156
    %vm162 = vcmp.ge.s32.totalorder %v154, %v156
    %v163 = vadd.s32 %v155, 17
    %v164 = vadd.s32 %v156, 17
    %vm165 = vcmp.lt.s32.totalorder %v152, %v163
    %vm166 = vcmp.lt.s32.totalorder %v153, %v163
    %vm167 = vcmp.lt.s32.totalorder %v154, %v163
    %vm168 = vcmp.lt.s32.totalorder %v152, %v164
    %vm169 = vcmp.lt.s32.totalorder %v153, %v164
    %vm170 = vcmp.lt.s32.totalorder %v154, %v164
    %vm171 = vmand %vm157, %vm165
    %vm172 = vmand %vm158, %vm166
    %vm173 = vmand %vm159, %vm167
    %vm174 = vmand %vm160, %vm168
    %vm175 = vmand %vm161, %vm169
    %vm176 = vmand %vm162, %vm170
    %v177 = vsel %vm171, 1.0, 0.0
    %v178 = vsel %vm172, 1.0, 0.0
    %v179 = vsel %vm173, 1.0, 0.0
    %v180 = vsel %vm174, 1.0, 0.0
    %v181 = vsel %vm175, 1.0, 0.0
    %v182 = vsel %vm176, 1.0, 0.0
    %vm183 = vcmask 130048
    %v185 = vsel %vm183, %v145, 0
    %v188 = vsel %vm183, %v146, 0
    %v191 = vsel %vm183, %v147, 0
    %193 = vmatprep.subr.mxu0 0.0
    %194 = vmatpush1.msra.mxu0 0.0
    %195 = vmatprep.subr.mxu0 0.0
    %196 = vmatpush1.msra.mxu0 0.0
    %197 = vmatprep.subr.mxu0 0.0
    %198 = vmatpush1.msra.mxu0 0.0
    %199 = vmatprep.subr.mxu0 0.0
    %200 = vmatpush1.msra.mxu0 0.0
    %201 = vmatprep.subr.mxu0 0.0
    %202 = vmatpush1.msra.mxu0 0.0
    %203 = vmatprep.subr.mxu0 0.0
    %204 = vmatpush1.msra.mxu0 0.0
    %205 = vmatprep.subr.mxu0 0.0
    %206 = vmatpush1.msra.mxu0 0.0
    %207 = vmatprep.subr.mxu0 0.0
    %208 = vmatpush1.msra.mxu0 0.0
    %209 = vmatprep.subr.mxu0 0.0
    %210 = vmatpush1.msra.mxu0 0.0
    %211 = vmatprep.subr.mxu0 0.0
    %212 = vmatpush1.msra.mxu0 0.0
    %213 = vmatprep.subr.mxu0 0.0
    %214 = vmatpush1.msra.mxu0 0.0
    %215 = vmatprep.subr.mxu0 0.0
    %216 = vmatpush1.msra.mxu0 0.0
    %217 = vmatprep.subr.mxu0 0.0
    %218 = vmatpush1.msra.mxu0 0.0
    %219 = vmatprep.subr.mxu0 0.0
    %220 = vmatpush1.msra.mxu0 0.0
    %221 = vmatprep.subr.mxu0 %v181
    %222 = vmatpush1.msra.mxu0 %v180
    %223 = vmatprep.subr.mxu0 %v178
    %224 = vmatpush1.msra.mxu0 %v177
    %225 = vmatprep.subr.mxu0 0.0
    %226 = vmatpush2.msra.mxu0 0.0
    %227 = vmatprep.subr.mxu0 0.0
    %228 = vmatpush2.msra.mxu0 0.0
    %229 = vmatprep.subr.mxu0 0.0
    %230 = vmatpush2.msra.mxu0 0.0
    %231 = vmatprep.subr.mxu0 0.0
    %232 = vmatpush2.msra.mxu0 0.0
    %233 = vmatprep.subr.mxu0 0.0
    %234 = vmatpush2.msra.mxu0 0.0
    %235 = vmatprep.subr.mxu0 0.0
    %236 = vmatpush2.msra.mxu0 0.0
    %237 = vmatprep.subr.mxu0 0.0
    %238 = vmatpush2.msra.mxu0 0.0
    %239 = vmatprep.subr.mxu0 0.0
    %240 = vmatpush2.msra.mxu0 0.0
    %241 = vmatprep.subr.mxu0 0.0
    %242 = vmatpush2.msra.mxu0 0.0
    %243 = vmatprep.subr.mxu0 0.0
    %244 = vmatpush2.msra.mxu0 0.0
    %245 = vmatprep.subr.mxu0 0.0
    %246 = vmatpush2.msra.mxu0 0.0
    %247 = vmatprep.subr.mxu0 0.0
    %248 = vmatpush2.msra.mxu0 0.0
    %249 = vmatprep.subr.mxu0 0.0
    %250 = vmatpush2.msra.mxu0 0.0
    %251 = vmatprep.subr.mxu0 0.0
    %252 = vmatpush2.msra.mxu0 0.0
    %253 = vmatprep.subr.mxu0 0.0
    %254 = vmatpush2.msra.mxu0 0.0
    %255 = vmatprep.subr.mxu0 0.0
    %256 = vmatpush2.msra.mxu0 0.0
    %257 = vmatprep.mubr.f32.mxu0 0.0
    %258 = vmatmul.mubr.f32.gmra.mxu0 %v185
    %v259 = vpop.f32.mrf.mxu0
    %v260 = vadd.f32 0.0, %v259
    %v261 = vpop.f32.mrf.mxu0
    %v262 = vadd.f32 0.0, %v261
    %263 = vmatprep.mubr.f32.mxu0 0.0
    %264 = vmatmul.mubr.f32.gmra.mxu0 %v188
    %v265 = vpop.f32.mrf.mxu0
    %v266 = vadd.f32 0.0, %v265
    %v267 = vpop.f32.mrf.mxu0
    %v268 = vadd.f32 0.0, %v267
    %269 = vmatprep.mubr.f32.mxu0 0.0
    %270 = vmatmul.mubr.f32.gmra.mxu0 %v191
    %v271 = vpop.f32.mrf.mxu0
    %v272 = vadd.f32 0.0, %v271
    %v273 = vpop.f32.mrf.mxu0
    %v274 = vadd.f32 0.0, %v273
    %275 = vdwg.mxu0
    %276 = vmatprep.subr.mxu0 0.0
    %277 = vmatpush1.msra.mxu0 0.0
    %278 = vmatprep.subr.mxu0 0.0
    %279 = vmatpush1.msra.mxu0 0.0
    %280 = vmatprep.subr.mxu0 0.0
    %281 = vmatpush1.msra.mxu0 0.0
    %282 = vmatprep.subr.mxu0 0.0
    %283 = vmatpush1.msra.mxu0 0.0
    %284 = vmatprep.subr.mxu0 0.0
    %285 = vmatpush1.msra.mxu0 0.0
    %286 = vmatprep.subr.mxu0 0.0
    %287 = vmatpush1.msra.mxu0 0.0
    %288 = vmatprep.subr.mxu0 0.0
    %289 = vmatpush1.msra.mxu0 0.0
    %290 = vmatprep.subr.mxu0 0.0
    %291 = vmatpush1.msra.mxu0 0.0
    %292 = vmatprep.subr.mxu0 0.0
    %293 = vmatpush1.msra.mxu0 0.0
    %294 = vmatprep.subr.mxu0 0.0
    %295 = vmatpush1.msra.mxu0 0.0
    %296 = vmatprep.subr.mxu0 0.0
    %297 = vmatpush1.msra.mxu0 0.0
    %298 = vmatprep.subr.mxu0 0.0
    %299 = vmatpush1.msra.mxu0 0.0
    %300 = vmatprep.subr.mxu0 0.0
    %301 = vmatpush1.msra.mxu0 0.0
    %302 = vmatprep.subr.mxu0 0.0
    %303 = vmatpush1.msra.mxu0 0.0
    %304 = vmatprep.subr.mxu0 0.0
    %305 = vmatpush1.msra.mxu0 %v182
    %306 = vmatprep.subr.mxu0 0.0
    %307 = vmatpush1.msra.mxu0 %v179
    %308 = vmatprep.subr.mxu0 0.0
    %309 = vmatpush2.msra.mxu0 0.0
    %310 = vmatprep.subr.mxu0 0.0
    %311 = vmatpush2.msra.mxu0 0.0
    %312 = vmatprep.subr.mxu0 0.0
    %313 = vmatpush2.msra.mxu0 0.0
    %314 = vmatprep.subr.mxu0 0.0
    %315 = vmatpush2.msra.mxu0 0.0
    %316 = vmatprep.subr.mxu0 0.0
    %317 = vmatpush2.msra.mxu0 0.0
    %318 = vmatprep.subr.mxu0 0.0
    %319 = vmatpush2.msra.mxu0 0.0
    %320 = vmatprep.subr.mxu0 0.0
    %321 = vmatpush2.msra.mxu0 0.0
    %322 = vmatprep.subr.mxu0 0.0
    %323 = vmatpush2.msra.mxu0 0.0
    %324 = vmatprep.subr.mxu0 0.0
    %325 = vmatpush2.msra.mxu0 0.0
    %326 = vmatprep.subr.mxu0 0.0
    %327 = vmatpush2.msra.mxu0 0.0
    %328 = vmatprep.subr.mxu0 0.0
    %329 = vmatpush2.msra.mxu0 0.0
    %330 = vmatprep.subr.mxu0 0.0
    %331 = vmatpush2.msra.mxu0 0.0
    %332 = vmatprep.subr.mxu0 0.0
    %333 = vmatpush2.msra.mxu0 0.0
    %334 = vmatprep.subr.mxu0 0.0
    %335 = vmatpush2.msra.mxu0 0.0
    %336 = vmatprep.subr.mxu0 0.0
    %337 = vmatpush2.msra.mxu0 0.0
    %338 = vmatprep.subr.mxu0 0.0
    %339 = vmatpush2.msra.mxu0 0.0
    %340 = vmatprep.mubr.f32.mxu0 0.0
    %341 = vmatmul.mubr.f32.gmra.mxu0 %v185
    %v342 = vpop.f32.mrf.mxu0
    %v343 = vadd.f32 0.0, %v342
    %v344 = vpop.f32.mrf.mxu0
    %345 = vmatprep.mubr.f32.mxu0 0.0
    %346 = vmatmul.mubr.f32.gmra.mxu0 %v188
    %v347 = vpop.f32.mrf.mxu0
    %v348 = vadd.f32 0.0, %v347
    %v349 = vpop.f32.mrf.mxu0
    %350 = vmatprep.mubr.f32.mxu0 0.0
    %351 = vmatmul.mubr.f32.gmra.mxu0 %v191
    %v352 = vpop.f32.mrf.mxu0
    %v353 = vadd.f32 0.0, %v352
    %v354 = vpop.f32.mrf.mxu0
    %355 = vdwg.mxu0
    %v357 = vlaneseq
    %v358 = vshrl.u32 %v357, 7
    %v359 = vsub.s32 0, %v358
    %v360 = vrot.slane %v118, %v359
    %v361 = vlaneseq
    %v362 = vshrl.u32 %v361, 7
    %v363 = vsub.s32 1, %v362
    %v364 = vrot.slane %v118, %v363
    %v365 = vlaneseq
    %v366 = vshrl.u32 %v365, 7
    %v367 = vsub.s32 2, %v366
    %v368 = vrot.slane %v118, %v367
    %v372 = vsub.f32 %v360, %v260
    %v373 = vsub.f32 %v364, %v262
    %v374 = vsub.f32 %v368, %v343
    %v375 = vsub.f32 %v360, %v266
    %v376 = vsub.f32 %v364, %v268
    %v377 = vsub.f32 %v368, %v348
    %v378 = vsub.f32 %v360, %v272
    %v379 = vsub.f32 %v364, %v274
    %v380 = vsub.f32 %v368, %v353
    %v381 = vstv %s103
    %v382 = vmul.f32 %v381, %v372
    %v383 = vmul.f32 %v381, %v373
    %v384 = vmul.f32 %v381, %v374
    %v385 = vmul.f32 %v381, %v375
    %v386 = vmul.f32 %v381, %v376
    %v387 = vmul.f32 %v381, %v377
    %v388 = vmul.f32 %v381, %v378
    %v389 = vmul.f32 %v381, %v379
    %v390 = vmul.f32 %v381, %v380
    %v391 = vmax.f32 %v382, 0.0
    %v392 = vmax.f32 %v383, 0.0
    %v393 = vmax.f32 %v384, 0.0
    %v394 = vmax.f32 %v385, 0.0
    %v395 = vmax.f32 %v386, 0.0
    %v396 = vmax.f32 %v387, 0.0
    %v397 = vmax.f32 %v388, 0.0
    %v398 = vmax.f32 %v389, 0.0
    %v399 = vmax.f32 %v390, 0.0
    %406 = vrot.lane.b32.xlu0 %v391, 17
    %v407 = vpop.permute.xlu0 %406
    %408 = vrot.lane.b32.xlu0 %v392, 17
    %v409 = vpop.permute.xlu0 %408
    %410 = vrot.lane.b32.xlu0 %v394, 17
    %v411 = vpop.permute.xlu0 %410
    %412 = vrot.lane.b32.xlu0 %v395, 17
    %v413 = vpop.permute.xlu0 %412
    %414 = vrot.lane.b32.xlu0 %v397, 17
    %v415 = vpop.permute.xlu0 %414
    %416 = vrot.lane.b32.xlu0 %v398, 17
    %v417 = vpop.permute.xlu0 %416
    %vm418 = vcmask 138240
    %v419 = vsel %vm418, %v407, %v409
    %v420 = vsel %vm418, %v411, %v413
    %v421 = vsel %vm418, %v415, %v417
    %v431 = vsub.f32 %v391, %v407
    %v432 = vsub.f32 %v392, %v419
    %v433 = vsub.f32 %v393, %v409
    %v434 = vsub.f32 %v394, %v411
    %v435 = vsub.f32 %v395, %v420
    %v436 = vsub.f32 %v396, %v413
    %v437 = vsub.f32 %v397, %v415
    %v438 = vsub.f32 %v398, %v421
    %v439 = vsub.f32 %v399, %v417
    %v440 = vand.u32 2147483647, %v431
    %v441 = vand.u32 2147483647, %v432
    %v442 = vand.u32 2147483647, %v433
    %v443 = vand.u32 2147483647, %v434
    %v444 = vand.u32 2147483647, %v435
    %v445 = vand.u32 2147483647, %v436
    %v446 = vand.u32 2147483647, %v437
    %v447 = vand.u32 2147483647, %v438
    %v448 = vand.u32 2147483647, %v439
    %vm449 = vcmp.ge.s32.totalorder %v152, 119
    %vm450 = vcmp.ge.s32.totalorder %v153, 119
    %vm451 = vcmp.lt.s32.totalorder %v152, 136
    %vm452 = vcmp.lt.s32.totalorder %v153, 136
    %vm453 = vmand %vm449, %vm451
    %vm454 = vmand %vm450, %vm452
    %v455 = vsel %vm453, 1, 0
    %v456 = vsel %vm454, 1, 0
    %vm457 = vcmp.eq.s32.totalorder %v455, 1
    %vm458 = vcmp.eq.s32.totalorder %v456, 1
    %468 = vrot.lane.b32.xlu0 %v440, 111
    %v469 = vpop.permute.xlu0 %468
    %470 = vrot.lane.b32.xlu0 %v441, 111
    %v471 = vpop.permute.xlu0 %470
    %472 = vrot.lane.b32.xlu0 %v442, 111
    %v473 = vpop.permute.xlu0 %472
    %474 = vrot.lane.b32.xlu0 %v443, 111
    %v475 = vpop.permute.xlu0 %474
    %476 = vrot.lane.b32.xlu0 %v444, 111
    %v477 = vpop.permute.xlu0 %476
    %478 = vrot.lane.b32.xlu0 %v445, 111
    %v479 = vpop.permute.xlu0 %478
    %480 = vrot.lane.b32.xlu0 %v446, 111
    %v481 = vpop.permute.xlu0 %480
    %482 = vrot.lane.b32.xlu0 %v447, 111
    %v483 = vpop.permute.xlu0 %482
    %484 = vrot.lane.b32.xlu0 %v448, 111
    %v485 = vpop.permute.xlu0 %484
    %vm486 = vcmask 908288
    %v487 = vsel %vm486, %v469, %v471
    %v488 = vsel %vm486, %v471, %v473
    %v489 = vsel %vm486, %v475, %v477
    %v490 = vsel %vm486, %v477, %v479
    %v491 = vsel %vm486, %v481, %v483
    %v492 = vsel %vm486, %v483, %v485
    %v499 = vsel %vm457, 0.0, %v487
    %v500 = vsel %vm458, 0.0, %v488
    %v501 = vsel %vm457, 0.0, %v489
    %v502 = vsel %vm458, 0.0, %v490
    %v503 = vsel %vm457, 0.0, %v491
    %v504 = vsel %vm458, 0.0, %v492
    %511 = vrot.lane.b32.xlu0 %v499, 9
    %v512 = vpop.permute.xlu0 %511
    %513 = vrot.lane.b32.xlu0 %v500, 9
    %v514 = vpop.permute.xlu0 %513
    %515 = vrot.lane.b32.xlu0 %v501, 9
    %v516 = vpop.permute.xlu0 %515
    %517 = vrot.lane.b32.xlu0 %v502, 9
    %v518 = vpop.permute.xlu0 %517
    %519 = vrot.lane.b32.xlu0 %v503, 9
    %v520 = vpop.permute.xlu0 %519
    %521 = vrot.lane.b32.xlu0 %v504, 9
    %v522 = vpop.permute.xlu0 %521
    %vm523 = vcmask 72704
    %v524 = vsel %vm523, %v512, %v514
    %v525 = vsel %vm523, %v516, %v518
    %v526 = vsel %vm523, %v520, %v522
    %v530 = vadd.f32 %v499, %v524
    %v531 = vadd.f32 %v501, %v525
    %v532 = vadd.f32 %v503, %v526
    %536 = vrot.lane.b32.xlu0 %v530, 8
    %v537 = vpop.permute.xlu0 %536
    %538 = vrot.lane.b32.xlu0 %v531, 8
    %v539 = vpop.permute.xlu0 %538
    %540 = vrot.lane.b32.xlu0 %v532, 8
    %v541 = vpop.permute.xlu0 %540
    %v545 = vadd.f32 %v500, %v537
    %v546 = vadd.f32 %v502, %v539
    %v547 = vadd.f32 %v504, %v541
    %548 = vrot.lane.b32.xlu0 %v530, 77
    %v549 = vpop.permute.xlu0 %548
    %550 = vrot.lane.b32.xlu0 %v531, 77
    %v551 = vpop.permute.xlu0 %550
    %552 = vrot.lane.b32.xlu0 %v532, 77
    %v553 = vpop.permute.xlu0 %552
    %v557 = vadd.f32 %v530, %v549
    %v558 = vadd.f32 %v531, %v551
    %v559 = vadd.f32 %v532, %v553
    %563 = vrot.lane.b32.xlu0 %v557, 76
    %v564 = vpop.permute.xlu0 %563
    %565 = vrot.lane.b32.xlu0 %v558, 76
    %v566 = vpop.permute.xlu0 %565
    %567 = vrot.lane.b32.xlu0 %v559, 76
    %v568 = vpop.permute.xlu0 %567
    %v572 = vadd.f32 %v545, %v564
    %v573 = vadd.f32 %v546, %v566
    %v574 = vadd.f32 %v547, %v568
    %575 = vrot.lane.b32.xlu0 %v557, 111
    %v576 = vpop.permute.xlu0 %575
    %577 = vrot.lane.b32.xlu0 %v558, 111
    %v578 = vpop.permute.xlu0 %577
    %579 = vrot.lane.b32.xlu0 %v559, 111
    %v580 = vpop.permute.xlu0 %579
    %v584 = vadd.f32 %v557, %v576
    %v585 = vadd.f32 %v558, %v578
    %v586 = vadd.f32 %v559, %v580
    %590 = vrot.lane.b32.xlu0 %v572, 18
    %v591 = vpop.permute.xlu0 %590
    %592 = vrot.lane.b32.xlu0 %v573, 18
    %v593 = vpop.permute.xlu0 %592
    %594 = vrot.lane.b32.xlu0 %v574, 18
    %v595 = vpop.permute.xlu0 %594
    %v599 = vadd.f32 %v584, %v591
    %v600 = vadd.f32 %v585, %v593
    %v601 = vadd.f32 %v586, %v595
    %v602 = vmul.f32 %v599, 0.5
    %v603 = vmul.f32 %v600, 0.5
    %v604 = vmul.f32 %v601, 0.5
    %v605 = vld [vmem:[%s4] sm:$0xff]
    %v606 = vld [vmem:[%s4 + $0x8] sm:$0xff]
    %v607 = vld [vmem:[%s4 + $0x10] sm:$0x1]
    %s608 = scalar_lea.vmem %s4, 24
    %v609 = vld [vmem:[%s608] sm:$0xff]
    %v610 = vld [vmem:[%s608 + $0x8] sm:$0xff]
    %v611 = vld [vmem:[%s608 + $0x10] sm:$0x1]
    %v612 = vmul.f32 %v609, %v602
    %v613 = vmul.f32 %v610, %v603
    %v614 = vmul.f32 %v611, %v604
    %v615 = vadd.f32 %v605, %v612
    %v616 = vadd.f32 %v606, %v613
    %v617 = vadd.f32 %v607, %v614
    %v618 = vld [vmem:[%s3] sm:$0xff]
    %v619 = vld [vmem:[%s3 + $0x8] sm:$0xff]
    %v620 = vld [vmem:[%s3 + $0x10] sm:$0xff]
    %v621 = vld [vmem:[%s3 + $0x18] sm:$0xff]
    %v622 = vld [vmem:[%s3 + $0x20] sm:$0xff]
    %v623 = vld [vmem:[%s3 + $0x28] sm:$0xff]
    %v624 = vld [vmem:[%s3 + $0x30] sm:$0x1]
    %v626 = vsel %vm418, %v618, 0
    %v629 = vsel %vm418, %v619, 0
    %v632 = vsel %vm418, %v620, 0
    %v635 = vsel %vm418, %v621, 0
    %v638 = vsel %vm418, %v622, 0
    %v641 = vsel %vm418, %v623, 0
    %vm643 = vcmask 1040384
    %v645 = vsel %vm643, %v617, 0
    %647 = vmatprep.subr.mxu0 0.0
    %648 = vmatpush1.msra.mxu0 0.0
    %649 = vmatprep.subr.mxu0 0.0
    %650 = vmatpush1.msra.mxu0 0.0
    %651 = vmatprep.subr.mxu0 0.0
    %652 = vmatpush1.msra.mxu0 0.0
    %653 = vmatprep.subr.mxu0 0.0
    %654 = vmatpush1.msra.mxu0 0.0
    %655 = vmatprep.subr.mxu0 0.0
    %656 = vmatpush1.msra.mxu0 0.0
    %657 = vmatprep.subr.mxu0 0.0
    %658 = vmatpush1.msra.mxu0 0.0
    %659 = vmatprep.subr.mxu0 0.0
    %660 = vmatpush1.msra.mxu0 0.0
    %661 = vmatprep.subr.mxu0 0.0
    %662 = vmatpush1.msra.mxu0 0.0
    %663 = vmatprep.subr.mxu0 0.0
    %664 = vmatpush1.msra.mxu0 0.0
    %665 = vmatprep.subr.mxu0 0.0
    %666 = vmatpush1.msra.mxu0 0.0
    %667 = vmatprep.subr.mxu0 0.0
    %668 = vmatpush1.msra.mxu0 0.0
    %669 = vmatprep.subr.mxu0 0.0
    %670 = vmatpush1.msra.mxu0 0.0
    %671 = vmatprep.subr.mxu0 0.0
    %672 = vmatpush1.msra.mxu0 0.0
    %673 = vmatprep.subr.mxu0 0.0
    %674 = vmatpush1.msra.mxu0 %v645
    %675 = vmatprep.subr.mxu0 0.0
    %676 = vmatpush1.msra.mxu0 %v616
    %677 = vmatprep.subr.mxu0 0.0
    %678 = vmatpush1.msra.mxu0 %v615
    %679 = vmatprep.subr.mxu0 0.0
    %680 = vmatpush2.msra.mxu0 0.0
    %681 = vmatprep.subr.mxu0 0.0
    %682 = vmatpush2.msra.mxu0 0.0
    %683 = vmatprep.subr.mxu0 0.0
    %684 = vmatpush2.msra.mxu0 0.0
    %685 = vmatprep.subr.mxu0 0.0
    %686 = vmatpush2.msra.mxu0 0.0
    %687 = vmatprep.subr.mxu0 0.0
    %688 = vmatpush2.msra.mxu0 0.0
    %689 = vmatprep.subr.mxu0 0.0
    %690 = vmatpush2.msra.mxu0 0.0
    %691 = vmatprep.subr.mxu0 0.0
    %692 = vmatpush2.msra.mxu0 0.0
    %693 = vmatprep.subr.mxu0 0.0
    %694 = vmatpush2.msra.mxu0 0.0
    %695 = vmatprep.subr.mxu0 0.0
    %696 = vmatpush2.msra.mxu0 0.0
    %697 = vmatprep.subr.mxu0 0.0
    %698 = vmatpush2.msra.mxu0 0.0
    %699 = vmatprep.subr.mxu0 0.0
    %700 = vmatpush2.msra.mxu0 0.0
    %701 = vmatprep.subr.mxu0 0.0
    %702 = vmatpush2.msra.mxu0 0.0
    %703 = vmatprep.subr.mxu0 0.0
    %704 = vmatpush2.msra.mxu0 0.0
    %705 = vmatprep.subr.mxu0 0.0
    %706 = vmatpush2.msra.mxu0 0.0
    %707 = vmatprep.subr.mxu0 0.0
    %708 = vmatpush2.msra.mxu0 0.0
    %709 = vmatprep.subr.mxu0 0.0
    %710 = vmatpush2.msra.mxu0 0.0
    %711 = vmatprep.mubr.f32.mxu0 0.0
    %712 = vmatmul.mubr.f32.gmra.mxu0 %v626
    %v713 = vpop.f32.mrf.mxu0
    %v714 = vadd.f32 0.0, %v713
    %v715 = vpop.f32.mrf.mxu0
    %716 = vmatprep.mubr.f32.mxu0 0.0
    %717 = vmatmul.mubr.f32.gmra.mxu0 %v629
    %v718 = vpop.f32.mrf.mxu0
    %v719 = vadd.f32 0.0, %v718
    %v720 = vpop.f32.mrf.mxu0
    %721 = vmatprep.mubr.f32.mxu0 0.0
    %722 = vmatmul.mubr.f32.gmra.mxu0 %v632
    %v723 = vpop.f32.mrf.mxu0
    %v724 = vadd.f32 0.0, %v723
    %v725 = vpop.f32.mrf.mxu0
    %726 = vmatprep.mubr.f32.mxu0 0.0
    %727 = vmatmul.mubr.f32.gmra.mxu0 %v635
    %v728 = vpop.f32.mrf.mxu0
    %v729 = vadd.f32 0.0, %v728
    %v730 = vpop.f32.mrf.mxu0
    %731 = vmatprep.mubr.f32.mxu0 0.0
    %732 = vmatmul.mubr.f32.gmra.mxu0 %v638
    %v733 = vpop.f32.mrf.mxu0
    %v734 = vadd.f32 0.0, %v733
    %v735 = vpop.f32.mrf.mxu0
    %736 = vmatprep.mubr.f32.mxu0 0.0
    %737 = vmatmul.mubr.f32.gmra.mxu0 %v641
    %v738 = vpop.f32.mrf.mxu0
    %v739 = vadd.f32 0.0, %v738
    %v740 = vpop.f32.mrf.mxu0
    %741 = vdwg.mxu0
    %v742 = vld [vmem:[%s5] sm:$0xff]
    %v743 = vld [vmem:[%s5 + $0x8] sm:$0xff]
    %v744 = vld [vmem:[%s5 + $0x10] sm:$0xff]
    %v745 = vld [vmem:[%s5 + $0x18] sm:$0xff]
    %v746 = vld [vmem:[%s5 + $0x20] sm:$0xff]
    %v747 = vld [vmem:[%s5 + $0x28] sm:$0xff]
    %v748 = vld [vmem:[%s5 + $0x30] sm:$0xff]
    %v749 = vld [vmem:[%s5 + $0x38] sm:$0xff]
    %v750 = vld [vmem:[%s5 + $0x40] sm:$0xff]
    %v751 = vld [vmem:[%s5 + $0x48] sm:$0xff]
    %v752 = vld [vmem:[%s5 + $0x50] sm:$0xff]
    %v753 = vld [vmem:[%s5 + $0x58] sm:$0xff]
    %v754 = vld [vmem:[%s5 + $0x60] sm:$0xff]
    %v755 = vld [vmem:[%s5 + $0x68] sm:$0xff]
    %v756 = vld [vmem:[%s5 + $0x70] sm:$0xff]
    %v757 = vld [vmem:[%s5 + $0x78] sm:$0xff]
    %vm758 = vcmask 793600
    %v760 = vsel %vm758, %v742, 0
    %v763 = vsel %vm758, %v743, 0
    %v766 = vsel %vm758, %v744, 0
    %v769 = vsel %vm758, %v745, 0
    %v772 = vsel %vm758, %v746, 0
    %v775 = vsel %vm758, %v747, 0
    %v778 = vsel %vm758, %v748, 0
    %v781 = vsel %vm758, %v749, 0
    %v784 = vsel %vm758, %v750, 0
    %v787 = vsel %vm758, %v751, 0
    %v790 = vsel %vm758, %v752, 0
    %v793 = vsel %vm758, %v753, 0
    %v796 = vsel %vm758, %v754, 0
    %v799 = vsel %vm758, %v755, 0
    %v802 = vsel %vm758, %v756, 0
    %v805 = vsel %vm758, %v757, 0
    %v808 = vsel %vm643, %v624, 0
    %810 = vmatprep.subr.mxu0 0.0
    %811 = vmatpush1.msra.mxu0 0.0
    %812 = vmatprep.subr.mxu0 0.0
    %813 = vmatpush1.msra.mxu0 0.0
    %814 = vmatprep.subr.mxu0 0.0
    %815 = vmatpush1.msra.mxu0 0.0
    %816 = vmatprep.subr.mxu0 0.0
    %v817 = vand.u32 %v808, 4294901760
    %818 = vmatpush1.msra.mxu0 %v817
    %819 = vmatprep.subr.mxu0 0.0
    %v820 = vand.u32 %v623, 4294901760
    %821 = vmatpush1.msra.mxu0 %v820
    %822 = vmatprep.subr.mxu0 0.0
    %v823 = vand.u32 %v622, 4294901760
    %824 = vmatpush1.msra.mxu0 %v823
    %825 = vmatprep.subr.mxu0 0.0
    %v826 = vand.u32 %v621, 4294901760
    %827 = vmatpush1.msra.mxu0 %v826
    %828 = vmatprep.subr.mxu0 0.0
    %v829 = vand.u32 %v620, 4294901760
    %830 = vmatpush1.msra.mxu0 %v829
    %831 = vmatprep.subr.mxu0 0.0
    %v832 = vand.u32 %v619, 4294901760
    %833 = vmatpush1.msra.mxu0 %v832
    %834 = vmatprep.subr.mxu0 0.0
    %v835 = vand.u32 %v618, 4294901760
    %836 = vmatpush1.msra.mxu0 %v835
    %837 = vmatprep.subr.mxu0 0.0
    %v838 = vand.u32 %v739, 4294901760
    %839 = vmatpush1.msra.mxu0 %v838
    %840 = vmatprep.subr.mxu0 0.0
    %v841 = vand.u32 %v734, 4294901760
    %842 = vmatpush1.msra.mxu0 %v841
    %843 = vmatprep.subr.mxu0 0.0
    %v844 = vand.u32 %v729, 4294901760
    %845 = vmatpush1.msra.mxu0 %v844
    %846 = vmatprep.subr.mxu0 0.0
    %v847 = vand.u32 %v724, 4294901760
    %848 = vmatpush1.msra.mxu0 %v847
    %849 = vmatprep.subr.mxu0 0.0
    %v850 = vand.u32 %v719, 4294901760
    %851 = vmatpush1.msra.mxu0 %v850
    %852 = vmatprep.subr.mxu0 0.0
    %v853 = vand.u32 %v714, 4294901760
    %854 = vmatpush1.msra.mxu0 %v853
    %855 = vmatprep.subr.mxu0 0.0
    %856 = vmatpush2.msra.mxu0 0.0
    %857 = vmatprep.subr.mxu0 0.0
    %858 = vmatpush2.msra.mxu0 0.0
    %859 = vmatprep.subr.mxu0 0.0
    %860 = vmatpush2.msra.mxu0 0.0
    %861 = vmatprep.subr.mxu0 0.0
    %862 = vmatpush2.msra.mxu0 0.0
    %863 = vmatprep.subr.mxu0 0.0
    %864 = vmatpush2.msra.mxu0 0.0
    %865 = vmatprep.subr.mxu0 0.0
    %866 = vmatpush2.msra.mxu0 0.0
    %867 = vmatprep.subr.mxu0 0.0
    %868 = vmatpush2.msra.mxu0 0.0
    %869 = vmatprep.subr.mxu0 0.0
    %870 = vmatpush2.msra.mxu0 0.0
    %871 = vmatprep.subr.mxu0 0.0
    %872 = vmatpush2.msra.mxu0 0.0
    %873 = vmatprep.subr.mxu0 0.0
    %874 = vmatpush2.msra.mxu0 0.0
    %875 = vmatprep.subr.mxu0 0.0
    %876 = vmatpush2.msra.mxu0 0.0
    %877 = vmatprep.subr.mxu0 0.0
    %878 = vmatpush2.msra.mxu0 0.0
    %879 = vmatprep.subr.mxu0 0.0
    %880 = vmatpush2.msra.mxu0 0.0
    %881 = vmatprep.subr.mxu0 0.0
    %882 = vmatpush2.msra.mxu0 0.0
    %883 = vmatprep.subr.mxu0 0.0
    %884 = vmatpush2.msra.mxu0 0.0
    %885 = vmatprep.subr.mxu0 0.0
    %886 = vmatpush2.msra.mxu0 0.0
    %887 = vmatprep.mubr.f32.mxu0 0.0
    %v888 = vand.u32 %v760, 4294901760
    %v889 = vsub.f32 %v760, %v888
    %v890 = vand.u32 %v889, 4294901760
    %v891 = vsub.f32 %v889, %v890
    %v892 = vand.u32 %v891, 4294901760
    %893 = vmatmul.mubr.f32.gmra.mxu0 %v892
    %v894 = vpop.f32.mrf.mxu0
    %v895 = vadd.f32 0.0, %v894
    %v896 = vpop.f32.mrf.mxu0
    %897 = vmatprep.mubr.f32.mxu0 0.0
    %v898 = vand.u32 %v763, 4294901760
    %v899 = vsub.f32 %v763, %v898
    %v900 = vand.u32 %v899, 4294901760
    %v901 = vsub.f32 %v899, %v900
    %v902 = vand.u32 %v901, 4294901760
    %903 = vmatmul.mubr.f32.gmra.mxu0 %v902
    %v904 = vpop.f32.mrf.mxu0
    %v905 = vadd.f32 0.0, %v904
    %v906 = vpop.f32.mrf.mxu0
    %907 = vmatprep.mubr.f32.mxu0 0.0
    %v908 = vand.u32 %v766, 4294901760
    %v909 = vsub.f32 %v766, %v908
    %v910 = vand.u32 %v909, 4294901760
    %v911 = vsub.f32 %v909, %v910
    %v912 = vand.u32 %v911, 4294901760
    %913 = vmatmul.mubr.f32.gmra.mxu0 %v912
    %v914 = vpop.f32.mrf.mxu0
    %v915 = vadd.f32 0.0, %v914
    %v916 = vpop.f32.mrf.mxu0
    %917 = vmatprep.mubr.f32.mxu0 0.0
    %v918 = vand.u32 %v769, 4294901760
    %v919 = vsub.f32 %v769, %v918
    %v920 = vand.u32 %v919, 4294901760
    %v921 = vsub.f32 %v919, %v920
    %v922 = vand.u32 %v921, 4294901760
    %923 = vmatmul.mubr.f32.gmra.mxu0 %v922
    %v924 = vpop.f32.mrf.mxu0
    %v925 = vadd.f32 0.0, %v924
    %v926 = vpop.f32.mrf.mxu0
    %927 = vmatprep.mubr.f32.mxu0 0.0
    %v928 = vand.u32 %v772, 4294901760
    %v929 = vsub.f32 %v772, %v928
    %v930 = vand.u32 %v929, 4294901760
    %v931 = vsub.f32 %v929, %v930
    %v932 = vand.u32 %v931, 4294901760
    %933 = vmatmul.mubr.f32.gmra.mxu0 %v932
    %v934 = vpop.f32.mrf.mxu0
    %v935 = vadd.f32 0.0, %v934
    %v936 = vpop.f32.mrf.mxu0
    %937 = vmatprep.mubr.f32.mxu0 0.0
    %v938 = vand.u32 %v775, 4294901760
    %v939 = vsub.f32 %v775, %v938
    %v940 = vand.u32 %v939, 4294901760
    %v941 = vsub.f32 %v939, %v940
    %v942 = vand.u32 %v941, 4294901760
    %943 = vmatmul.mubr.f32.gmra.mxu0 %v942
    %v944 = vpop.f32.mrf.mxu0
    %v945 = vadd.f32 0.0, %v944
    %v946 = vpop.f32.mrf.mxu0
    %947 = vmatprep.mubr.f32.mxu0 0.0
    %v948 = vand.u32 %v778, 4294901760
    %v949 = vsub.f32 %v778, %v948
    %v950 = vand.u32 %v949, 4294901760
    %v951 = vsub.f32 %v949, %v950
    %v952 = vand.u32 %v951, 4294901760
    %953 = vmatmul.mubr.f32.gmra.mxu0 %v952
    %v954 = vpop.f32.mrf.mxu0
    %v955 = vadd.f32 0.0, %v954
    %v956 = vpop.f32.mrf.mxu0
    %957 = vmatprep.mubr.f32.mxu0 0.0
    %v958 = vand.u32 %v781, 4294901760
    %v959 = vsub.f32 %v781, %v958
    %v960 = vand.u32 %v959, 4294901760
    %v961 = vsub.f32 %v959, %v960
    %v962 = vand.u32 %v961, 4294901760
    %963 = vmatmul.mubr.f32.gmra.mxu0 %v962
    %v964 = vpop.f32.mrf.mxu0
    %v965 = vadd.f32 0.0, %v964
    %v966 = vpop.f32.mrf.mxu0
    %967 = vmatprep.mubr.f32.mxu0 0.0
    %v968 = vand.u32 %v784, 4294901760
    %v969 = vsub.f32 %v784, %v968
    %v970 = vand.u32 %v969, 4294901760
    %v971 = vsub.f32 %v969, %v970
    %v972 = vand.u32 %v971, 4294901760
    %973 = vmatmul.mubr.f32.gmra.mxu0 %v972
    %v974 = vpop.f32.mrf.mxu0
    %v975 = vadd.f32 0.0, %v974
    %v976 = vpop.f32.mrf.mxu0
    %977 = vmatprep.mubr.f32.mxu0 0.0
    %v978 = vand.u32 %v787, 4294901760
    %v979 = vsub.f32 %v787, %v978
    %v980 = vand.u32 %v979, 4294901760
    %v981 = vsub.f32 %v979, %v980
    %v982 = vand.u32 %v981, 4294901760
    %983 = vmatmul.mubr.f32.gmra.mxu0 %v982
    %v984 = vpop.f32.mrf.mxu0
    %v985 = vadd.f32 0.0, %v984
    %v986 = vpop.f32.mrf.mxu0
    %987 = vmatprep.mubr.f32.mxu0 0.0
    %v988 = vand.u32 %v790, 4294901760
    %v989 = vsub.f32 %v790, %v988
    %v990 = vand.u32 %v989, 4294901760
    %v991 = vsub.f32 %v989, %v990
    %v992 = vand.u32 %v991, 4294901760
    %993 = vmatmul.mubr.f32.gmra.mxu0 %v992
    %v994 = vpop.f32.mrf.mxu0
    %v995 = vadd.f32 0.0, %v994
    %v996 = vpop.f32.mrf.mxu0
    %997 = vmatprep.mubr.f32.mxu0 0.0
    %v998 = vand.u32 %v793, 4294901760
    %v999 = vsub.f32 %v793, %v998
    %v1000 = vand.u32 %v999, 4294901760
    %v1001 = vsub.f32 %v999, %v1000
    %v1002 = vand.u32 %v1001, 4294901760
    %1003 = vmatmul.mubr.f32.gmra.mxu0 %v1002
    %v1004 = vpop.f32.mrf.mxu0
    %v1005 = vadd.f32 0.0, %v1004
    %v1006 = vpop.f32.mrf.mxu0
    %1007 = vmatprep.mubr.f32.mxu0 0.0
    %v1008 = vand.u32 %v796, 4294901760
    %v1009 = vsub.f32 %v796, %v1008
    %v1010 = vand.u32 %v1009, 4294901760
    %v1011 = vsub.f32 %v1009, %v1010
    %v1012 = vand.u32 %v1011, 4294901760
    %1013 = vmatmul.mubr.f32.gmra.mxu0 %v1012
    %v1014 = vpop.f32.mrf.mxu0
    %v1015 = vadd.f32 0.0, %v1014
    %v1016 = vpop.f32.mrf.mxu0
    %1017 = vmatprep.mubr.f32.mxu0 0.0
    %v1018 = vand.u32 %v799, 4294901760
    %v1019 = vsub.f32 %v799, %v1018
    %v1020 = vand.u32 %v1019, 4294901760
    %v1021 = vsub.f32 %v1019, %v1020
    %v1022 = vand.u32 %v1021, 4294901760
    %1023 = vmatmul.mubr.f32.gmra.mxu0 %v1022
    %v1024 = vpop.f32.mrf.mxu0
    %v1025 = vadd.f32 0.0, %v1024
    %v1026 = vpop.f32.mrf.mxu0
    %1027 = vmatprep.mubr.f32.mxu0 0.0
    %v1028 = vand.u32 %v802, 4294901760
    %v1029 = vsub.f32 %v802, %v1028
    %v1030 = vand.u32 %v1029, 4294901760
    %v1031 = vsub.f32 %v1029, %v1030
    %v1032 = vand.u32 %v1031, 4294901760
    %1033 = vmatmul.mubr.f32.gmra.mxu0 %v1032
    %v1034 = vpop.f32.mrf.mxu0
    %v1035 = vadd.f32 0.0, %v1034
    %v1036 = vpop.f32.mrf.mxu0
    %1037 = vmatprep.mubr.f32.mxu0 0.0
    %v1038 = vand.u32 %v805, 4294901760
    %v1039 = vsub.f32 %v805, %v1038
    %v1040 = vand.u32 %v1039, 4294901760
    %v1041 = vsub.f32 %v1039, %v1040
    %v1042 = vand.u32 %v1041, 4294901760
    %1043 = vmatmul.mubr.f32.gmra.mxu0 %v1042
    %v1044 = vpop.f32.mrf.mxu0
    %v1045 = vadd.f32 0.0, %v1044
    %v1046 = vpop.f32.mrf.mxu0
    %1047 = vdwg.mxu0
    %1048 = vmatprep.subr.mxu0 0.0
    %1049 = vmatpush1.msra.mxu0 0.0
    %1050 = vmatprep.subr.mxu0 0.0
    %1051 = vmatpush1.msra.mxu0 0.0
    %1052 = vmatprep.subr.mxu0 0.0
    %1053 = vmatpush1.msra.mxu0 0.0
    %1054 = vmatprep.subr.mxu0 0.0
    %v1055 = vand.u32 %v808, 4294901760
    %v1056 = vsub.f32 %v808, %v1055
    %v1057 = vand.u32 %v1056, 4294901760
    %v1058 = vsub.f32 %v1056, %v1057
    %v1059 = vand.u32 %v1058, 4294901760
    %1060 = vmatpush1.msra.mxu0 %v1059
    %1061 = vmatprep.subr.mxu0 0.0
    %v1062 = vand.u32 %v623, 4294901760
    %v1063 = vsub.f32 %v623, %v1062
    %v1064 = vand.u32 %v1063, 4294901760
    %v1065 = vsub.f32 %v1063, %v1064
    %v1066 = vand.u32 %v1065, 4294901760
    %1067 = vmatpush1.msra.mxu0 %v1066
    %1068 = vmatprep.subr.mxu0 0.0
    %v1069 = vand.u32 %v622, 4294901760
    %v1070 = vsub.f32 %v622, %v1069
    %v1071 = vand.u32 %v1070, 4294901760
    %v1072 = vsub.f32 %v1070, %v1071
    %v1073 = vand.u32 %v1072, 4294901760
    %1074 = vmatpush1.msra.mxu0 %v1073
    %1075 = vmatprep.subr.mxu0 0.0
    %v1076 = vand.u32 %v621, 4294901760
    %v1077 = vsub.f32 %v621, %v1076
    %v1078 = vand.u32 %v1077, 4294901760
    %v1079 = vsub.f32 %v1077, %v1078
    %v1080 = vand.u32 %v1079, 4294901760
    %1081 = vmatpush1.msra.mxu0 %v1080
    %1082 = vmatprep.subr.mxu0 0.0
    %v1083 = vand.u32 %v620, 4294901760
    %v1084 = vsub.f32 %v620, %v1083
    %v1085 = vand.u32 %v1084, 4294901760
    %v1086 = vsub.f32 %v1084, %v1085
    %v1087 = vand.u32 %v1086, 4294901760
    %1088 = vmatpush1.msra.mxu0 %v1087
    %1089 = vmatprep.subr.mxu0 0.0
    %v1090 = vand.u32 %v619, 4294901760
    %v1091 = vsub.f32 %v619, %v1090
    %v1092 = vand.u32 %v1091, 4294901760
    %v1093 = vsub.f32 %v1091, %v1092
    %v1094 = vand.u32 %v1093, 4294901760
    %1095 = vmatpush1.msra.mxu0 %v1094
    %1096 = vmatprep.subr.mxu0 0.0
    %v1097 = vand.u32 %v618, 4294901760
    %v1098 = vsub.f32 %v618, %v1097
    %v1099 = vand.u32 %v1098, 4294901760
    %v1100 = vsub.f32 %v1098, %v1099
    %v1101 = vand.u32 %v1100, 4294901760
    %1102 = vmatpush1.msra.mxu0 %v1101
    %1103 = vmatprep.subr.mxu0 0.0
    %v1104 = vand.u32 %v739, 4294901760
    %v1105 = vsub.f32 %v739, %v1104
    %v1106 = vand.u32 %v1105, 4294901760
    %v1107 = vsub.f32 %v1105, %v1106
    %v1108 = vand.u32 %v1107, 4294901760
    %1109 = vmatpush1.msra.mxu0 %v1108
    %1110 = vmatprep.subr.mxu0 0.0
    %v1111 = vand.u32 %v734, 4294901760
    %v1112 = vsub.f32 %v734, %v1111
    %v1113 = vand.u32 %v1112, 4294901760
    %v1114 = vsub.f32 %v1112, %v1113
    %v1115 = vand.u32 %v1114, 4294901760
    %1116 = vmatpush1.msra.mxu0 %v1115
    %1117 = vmatprep.subr.mxu0 0.0
    %v1118 = vand.u32 %v729, 4294901760
    %v1119 = vsub.f32 %v729, %v1118
    %v1120 = vand.u32 %v1119, 4294901760
    %v1121 = vsub.f32 %v1119, %v1120
    %v1122 = vand.u32 %v1121, 4294901760
    %1123 = vmatpush1.msra.mxu0 %v1122
    %1124 = vmatprep.subr.mxu0 0.0
    %v1125 = vand.u32 %v724, 4294901760
    %v1126 = vsub.f32 %v724, %v1125
    %v1127 = vand.u32 %v1126, 4294901760
    %v1128 = vsub.f32 %v1126, %v1127
    %v1129 = vand.u32 %v1128, 4294901760
    %1130 = vmatpush1.msra.mxu0 %v1129
    %1131 = vmatprep.subr.mxu0 0.0
    %v1132 = vand.u32 %v719, 4294901760
    %v1133 = vsub.f32 %v719, %v1132
    %v1134 = vand.u32 %v1133, 4294901760
    %v1135 = vsub.f32 %v1133, %v1134
    %v1136 = vand.u32 %v1135, 4294901760
    %1137 = vmatpush1.msra.mxu0 %v1136
    %1138 = vmatprep.subr.mxu0 0.0
    %v1139 = vand.u32 %v714, 4294901760
    %v1140 = vsub.f32 %v714, %v1139
    %v1141 = vand.u32 %v1140, 4294901760
    %v1142 = vsub.f32 %v1140, %v1141
    %v1143 = vand.u32 %v1142, 4294901760
    %1144 = vmatpush1.msra.mxu0 %v1143
    %1145 = vmatprep.subr.mxu0 0.0
    %1146 = vmatpush2.msra.mxu0 0.0
    %1147 = vmatprep.subr.mxu0 0.0
    %1148 = vmatpush2.msra.mxu0 0.0
    %1149 = vmatprep.subr.mxu0 0.0
    %1150 = vmatpush2.msra.mxu0 0.0
    %1151 = vmatprep.subr.mxu0 0.0
    %1152 = vmatpush2.msra.mxu0 0.0
    %1153 = vmatprep.subr.mxu0 0.0
    %1154 = vmatpush2.msra.mxu0 0.0
    %1155 = vmatprep.subr.mxu0 0.0
    %1156 = vmatpush2.msra.mxu0 0.0
    %1157 = vmatprep.subr.mxu0 0.0
    %1158 = vmatpush2.msra.mxu0 0.0
    %1159 = vmatprep.subr.mxu0 0.0
    %1160 = vmatpush2.msra.mxu0 0.0
    %1161 = vmatprep.subr.mxu0 0.0
    %1162 = vmatpush2.msra.mxu0 0.0
    %1163 = vmatprep.subr.mxu0 0.0
    %1164 = vmatpush2.msra.mxu0 0.0
    %1165 = vmatprep.subr.mxu0 0.0
    %1166 = vmatpush2.msra.mxu0 0.0
    %1167 = vmatprep.subr.mxu0 0.0
    %1168 = vmatpush2.msra.mxu0 0.0
    %1169 = vmatprep.subr.mxu0 0.0
    %1170 = vmatpush2.msra.mxu0 0.0
    %1171 = vmatprep.subr.mxu0 0.0
    %1172 = vmatpush2.msra.mxu0 0.0
    %1173 = vmatprep.subr.mxu0 0.0
    %1174 = vmatpush2.msra.mxu0 0.0
    %1175 = vmatprep.subr.mxu0 0.0
    %1176 = vmatpush2.msra.mxu0 0.0
    %1177 = vmatprep.mubr.f32.mxu0 0.0
    %v1178 = vand.u32 %v760, 4294901760
    %1179 = vmatmul.mubr.f32.gmra.mxu0 %v1178
    %v1180 = vpop.f32.mrf.mxu0
    %v1181 = vadd.f32 %v895, %v1180
    %v1182 = vpop.f32.mrf.mxu0
    %1183 = vmatprep.mubr.f32.mxu0 0.0
    %v1184 = vand.u32 %v763, 4294901760
    %1185 = vmatmul.mubr.f32.gmra.mxu0 %v1184
    %v1186 = vpop.f32.mrf.mxu0
    %v1187 = vadd.f32 %v905, %v1186
    %v1188 = vpop.f32.mrf.mxu0
    %1189 = vmatprep.mubr.f32.mxu0 0.0
    %v1190 = vand.u32 %v766, 4294901760
    %1191 = vmatmul.mubr.f32.gmra.mxu0 %v1190
    %v1192 = vpop.f32.mrf.mxu0
    %v1193 = vadd.f32 %v915, %v1192
    %v1194 = vpop.f32.mrf.mxu0
    %1195 = vmatprep.mubr.f32.mxu0 0.0
    %v1196 = vand.u32 %v769, 4294901760
    %1197 = vmatmul.mubr.f32.gmra.mxu0 %v1196
    %v1198 = vpop.f32.mrf.mxu0
    %v1199 = vadd.f32 %v925, %v1198
    %v1200 = vpop.f32.mrf.mxu0
    %1201 = vmatprep.mubr.f32.mxu0 0.0
    %v1202 = vand.u32 %v772, 4294901760
    %1203 = vmatmul.mubr.f32.gmra.mxu0 %v1202
    %v1204 = vpop.f32.mrf.mxu0
    %v1205 = vadd.f32 %v935, %v1204
    %v1206 = vpop.f32.mrf.mxu0
    %1207 = vmatprep.mubr.f32.mxu0 0.0
    %v1208 = vand.u32 %v775, 4294901760
    %1209 = vmatmul.mubr.f32.gmra.mxu0 %v1208
    %v1210 = vpop.f32.mrf.mxu0
    %v1211 = vadd.f32 %v945, %v1210
    %v1212 = vpop.f32.mrf.mxu0
    %1213 = vmatprep.mubr.f32.mxu0 0.0
    %v1214 = vand.u32 %v778, 4294901760
    %1215 = vmatmul.mubr.f32.gmra.mxu0 %v1214
    %v1216 = vpop.f32.mrf.mxu0
    %v1217 = vadd.f32 %v955, %v1216
    %v1218 = vpop.f32.mrf.mxu0
    %1219 = vmatprep.mubr.f32.mxu0 0.0
    %v1220 = vand.u32 %v781, 4294901760
    %1221 = vmatmul.mubr.f32.gmra.mxu0 %v1220
    %v1222 = vpop.f32.mrf.mxu0
    %v1223 = vadd.f32 %v965, %v1222
    %v1224 = vpop.f32.mrf.mxu0
    %1225 = vmatprep.mubr.f32.mxu0 0.0
    %v1226 = vand.u32 %v784, 4294901760
    %1227 = vmatmul.mubr.f32.gmra.mxu0 %v1226
    %v1228 = vpop.f32.mrf.mxu0
    %v1229 = vadd.f32 %v975, %v1228
    %v1230 = vpop.f32.mrf.mxu0
    %1231 = vmatprep.mubr.f32.mxu0 0.0
    %v1232 = vand.u32 %v787, 4294901760
    %1233 = vmatmul.mubr.f32.gmra.mxu0 %v1232
    %v1234 = vpop.f32.mrf.mxu0
    %v1235 = vadd.f32 %v985, %v1234
    %v1236 = vpop.f32.mrf.mxu0
    %1237 = vmatprep.mubr.f32.mxu0 0.0
    %v1238 = vand.u32 %v790, 4294901760
    %1239 = vmatmul.mubr.f32.gmra.mxu0 %v1238
    %v1240 = vpop.f32.mrf.mxu0
    %v1241 = vadd.f32 %v995, %v1240
    %v1242 = vpop.f32.mrf.mxu0
    %1243 = vmatprep.mubr.f32.mxu0 0.0
    %v1244 = vand.u32 %v793, 4294901760
    %1245 = vmatmul.mubr.f32.gmra.mxu0 %v1244
    %v1246 = vpop.f32.mrf.mxu0
    %v1247 = vadd.f32 %v1005, %v1246
    %v1248 = vpop.f32.mrf.mxu0
    %1249 = vmatprep.mubr.f32.mxu0 0.0
    %v1250 = vand.u32 %v796, 4294901760
    %1251 = vmatmul.mubr.f32.gmra.mxu0 %v1250
    %v1252 = vpop.f32.mrf.mxu0
    %v1253 = vadd.f32 %v1015, %v1252
    %v1254 = vpop.f32.mrf.mxu0
    %1255 = vmatprep.mubr.f32.mxu0 0.0
    %v1256 = vand.u32 %v799, 4294901760
    %1257 = vmatmul.mubr.f32.gmra.mxu0 %v1256
    %v1258 = vpop.f32.mrf.mxu0
    %v1259 = vadd.f32 %v1025, %v1258
    %v1260 = vpop.f32.mrf.mxu0
    %1261 = vmatprep.mubr.f32.mxu0 0.0
    %v1262 = vand.u32 %v802, 4294901760
    %1263 = vmatmul.mubr.f32.gmra.mxu0 %v1262
    %v1264 = vpop.f32.mrf.mxu0
    %v1265 = vadd.f32 %v1035, %v1264
    %v1266 = vpop.f32.mrf.mxu0
    %1267 = vmatprep.mubr.f32.mxu0 0.0
    %v1268 = vand.u32 %v805, 4294901760
    %1269 = vmatmul.mubr.f32.gmra.mxu0 %v1268
    %v1270 = vpop.f32.mrf.mxu0
    %v1271 = vadd.f32 %v1045, %v1270
    %v1272 = vpop.f32.mrf.mxu0
    %1273 = vdwg.mxu0
    %1274 = vmatprep.subr.mxu0 0.0
    %1275 = vmatpush1.msra.mxu0 0.0
    %1276 = vmatprep.subr.mxu0 0.0
    %1277 = vmatpush1.msra.mxu0 0.0
    %1278 = vmatprep.subr.mxu0 0.0
    %1279 = vmatpush1.msra.mxu0 0.0
    %1280 = vmatprep.subr.mxu0 0.0
    %v1281 = vand.u32 %v808, 4294901760
    %v1282 = vsub.f32 %v808, %v1281
    %1283 = vmatpush1.msra.mxu0 %v1282
    %1284 = vmatprep.subr.mxu0 0.0
    %v1285 = vand.u32 %v623, 4294901760
    %v1286 = vsub.f32 %v623, %v1285
    %1287 = vmatpush1.msra.mxu0 %v1286
    %1288 = vmatprep.subr.mxu0 0.0
    %v1289 = vand.u32 %v622, 4294901760
    %v1290 = vsub.f32 %v622, %v1289
    %1291 = vmatpush1.msra.mxu0 %v1290
    %1292 = vmatprep.subr.mxu0 0.0
    %v1293 = vand.u32 %v621, 4294901760
    %v1294 = vsub.f32 %v621, %v1293
    %1295 = vmatpush1.msra.mxu0 %v1294
    %1296 = vmatprep.subr.mxu0 0.0
    %v1297 = vand.u32 %v620, 4294901760
    %v1298 = vsub.f32 %v620, %v1297
    %1299 = vmatpush1.msra.mxu0 %v1298
    %1300 = vmatprep.subr.mxu0 0.0
    %v1301 = vand.u32 %v619, 4294901760
    %v1302 = vsub.f32 %v619, %v1301
    %1303 = vmatpush1.msra.mxu0 %v1302
    %1304 = vmatprep.subr.mxu0 0.0
    %v1305 = vand.u32 %v618, 4294901760
    %v1306 = vsub.f32 %v618, %v1305
    %1307 = vmatpush1.msra.mxu0 %v1306
    %1308 = vmatprep.subr.mxu0 0.0
    %v1309 = vand.u32 %v739, 4294901760
    %v1310 = vsub.f32 %v739, %v1309
    %1311 = vmatpush1.msra.mxu0 %v1310
    %1312 = vmatprep.subr.mxu0 0.0
    %v1313 = vand.u32 %v734, 4294901760
    %v1314 = vsub.f32 %v734, %v1313
    %1315 = vmatpush1.msra.mxu0 %v1314
    %1316 = vmatprep.subr.mxu0 0.0
    %v1317 = vand.u32 %v729, 4294901760
    %v1318 = vsub.f32 %v729, %v1317
    %1319 = vmatpush1.msra.mxu0 %v1318
    %1320 = vmatprep.subr.mxu0 0.0
    %v1321 = vand.u32 %v724, 4294901760
    %v1322 = vsub.f32 %v724, %v1321
    %1323 = vmatpush1.msra.mxu0 %v1322
    %1324 = vmatprep.subr.mxu0 0.0
    %v1325 = vand.u32 %v719, 4294901760
    %v1326 = vsub.f32 %v719, %v1325
    %1327 = vmatpush1.msra.mxu0 %v1326
    %1328 = vmatprep.subr.mxu0 0.0
    %v1329 = vand.u32 %v714, 4294901760
    %v1330 = vsub.f32 %v714, %v1329
    %1331 = vmatpush1.msra.mxu0 %v1330
    %1332 = vmatprep.subr.mxu0 0.0
    %1333 = vmatpush2.msra.mxu0 0.0
    %1334 = vmatprep.subr.mxu0 0.0
    %1335 = vmatpush2.msra.mxu0 0.0
    %1336 = vmatprep.subr.mxu0 0.0
    %1337 = vmatpush2.msra.mxu0 0.0
    %1338 = vmatprep.subr.mxu0 0.0
    %1339 = vmatpush2.msra.mxu0 0.0
    %1340 = vmatprep.subr.mxu0 0.0
    %1341 = vmatpush2.msra.mxu0 0.0
    %1342 = vmatprep.subr.mxu0 0.0
    %1343 = vmatpush2.msra.mxu0 0.0
    %1344 = vmatprep.subr.mxu0 0.0
    %1345 = vmatpush2.msra.mxu0 0.0
    %1346 = vmatprep.subr.mxu0 0.0
    %1347 = vmatpush2.msra.mxu0 0.0
    %1348 = vmatprep.subr.mxu0 0.0
    %1349 = vmatpush2.msra.mxu0 0.0
    %1350 = vmatprep.subr.mxu0 0.0
    %1351 = vmatpush2.msra.mxu0 0.0
    %1352 = vmatprep.subr.mxu0 0.0
    %1353 = vmatpush2.msra.mxu0 0.0
    %1354 = vmatprep.subr.mxu0 0.0
    %1355 = vmatpush2.msra.mxu0 0.0
    %1356 = vmatprep.subr.mxu0 0.0
    %1357 = vmatpush2.msra.mxu0 0.0
    %1358 = vmatprep.subr.mxu0 0.0
    %1359 = vmatpush2.msra.mxu0 0.0
    %1360 = vmatprep.subr.mxu0 0.0
    %1361 = vmatpush2.msra.mxu0 0.0
    %1362 = vmatprep.subr.mxu0 0.0
    %1363 = vmatpush2.msra.mxu0 0.0
    %1364 = vmatprep.mubr.f32.mxu0 0.0
    %v1365 = vand.u32 %v760, 4294901760
    %v1366 = vsub.f32 %v760, %v1365
    %1367 = vmatmul.mubr.f32.gmra.mxu0 %v1366
    %v1368 = vpop.f32.mrf.mxu0
    %v1369 = vadd.f32 %v1181, %v1368
    %v1370 = vpop.f32.mrf.mxu0
    %1371 = vmatprep.mubr.f32.mxu0 0.0
    %v1372 = vand.u32 %v763, 4294901760
    %v1373 = vsub.f32 %v763, %v1372
    %1374 = vmatmul.mubr.f32.gmra.mxu0 %v1373
    %v1375 = vpop.f32.mrf.mxu0
    %v1376 = vadd.f32 %v1187, %v1375
    %v1377 = vpop.f32.mrf.mxu0
    %1378 = vmatprep.mubr.f32.mxu0 0.0
    %v1379 = vand.u32 %v766, 4294901760
    %v1380 = vsub.f32 %v766, %v1379
    %1381 = vmatmul.mubr.f32.gmra.mxu0 %v1380
    %v1382 = vpop.f32.mrf.mxu0
    %v1383 = vadd.f32 %v1193, %v1382
    %v1384 = vpop.f32.mrf.mxu0
    %1385 = vmatprep.mubr.f32.mxu0 0.0
    %v1386 = vand.u32 %v769, 4294901760
    %v1387 = vsub.f32 %v769, %v1386
    %1388 = vmatmul.mubr.f32.gmra.mxu0 %v1387
    %v1389 = vpop.f32.mrf.mxu0
    %v1390 = vadd.f32 %v1199, %v1389
    %v1391 = vpop.f32.mrf.mxu0
    %1392 = vmatprep.mubr.f32.mxu0 0.0
    %v1393 = vand.u32 %v772, 4294901760
    %v1394 = vsub.f32 %v772, %v1393
    %1395 = vmatmul.mubr.f32.gmra.mxu0 %v1394
    %v1396 = vpop.f32.mrf.mxu0
    %v1397 = vadd.f32 %v1205, %v1396
    %v1398 = vpop.f32.mrf.mxu0
    %1399 = vmatprep.mubr.f32.mxu0 0.0
    %v1400 = vand.u32 %v775, 4294901760
    %v1401 = vsub.f32 %v775, %v1400
    %1402 = vmatmul.mubr.f32.gmra.mxu0 %v1401
    %v1403 = vpop.f32.mrf.mxu0
    %v1404 = vadd.f32 %v1211, %v1403
    %v1405 = vpop.f32.mrf.mxu0
    %1406 = vmatprep.mubr.f32.mxu0 0.0
    %v1407 = vand.u32 %v778, 4294901760
    %v1408 = vsub.f32 %v778, %v1407
    %1409 = vmatmul.mubr.f32.gmra.mxu0 %v1408
    %v1410 = vpop.f32.mrf.mxu0
    %v1411 = vadd.f32 %v1217, %v1410
    %v1412 = vpop.f32.mrf.mxu0
    %1413 = vmatprep.mubr.f32.mxu0 0.0
    %v1414 = vand.u32 %v781, 4294901760
    %v1415 = vsub.f32 %v781, %v1414
    %1416 = vmatmul.mubr.f32.gmra.mxu0 %v1415
    %v1417 = vpop.f32.mrf.mxu0
    %v1418 = vadd.f32 %v1223, %v1417
    %v1419 = vpop.f32.mrf.mxu0
    %1420 = vmatprep.mubr.f32.mxu0 0.0
    %v1421 = vand.u32 %v784, 4294901760
    %v1422 = vsub.f32 %v784, %v1421
    %1423 = vmatmul.mubr.f32.gmra.mxu0 %v1422
    %v1424 = vpop.f32.mrf.mxu0
    %v1425 = vadd.f32 %v1229, %v1424
    %v1426 = vpop.f32.mrf.mxu0
    %1427 = vmatprep.mubr.f32.mxu0 0.0
    %v1428 = vand.u32 %v787, 4294901760
    %v1429 = vsub.f32 %v787, %v1428
    %1430 = vmatmul.mubr.f32.gmra.mxu0 %v1429
    %v1431 = vpop.f32.mrf.mxu0
    %v1432 = vadd.f32 %v1235, %v1431
    %v1433 = vpop.f32.mrf.mxu0
    %1434 = vmatprep.mubr.f32.mxu0 0.0
    %v1435 = vand.u32 %v790, 4294901760
    %v1436 = vsub.f32 %v790, %v1435
    %1437 = vmatmul.mubr.f32.gmra.mxu0 %v1436
    %v1438 = vpop.f32.mrf.mxu0
    %v1439 = vadd.f32 %v1241, %v1438
    %v1440 = vpop.f32.mrf.mxu0
    %1441 = vmatprep.mubr.f32.mxu0 0.0
    %v1442 = vand.u32 %v793, 4294901760
    %v1443 = vsub.f32 %v793, %v1442
    %1444 = vmatmul.mubr.f32.gmra.mxu0 %v1443
    %v1445 = vpop.f32.mrf.mxu0
    %v1446 = vadd.f32 %v1247, %v1445
    %v1447 = vpop.f32.mrf.mxu0
    %1448 = vmatprep.mubr.f32.mxu0 0.0
    %v1449 = vand.u32 %v796, 4294901760
    %v1450 = vsub.f32 %v796, %v1449
    %1451 = vmatmul.mubr.f32.gmra.mxu0 %v1450
    %v1452 = vpop.f32.mrf.mxu0
    %v1453 = vadd.f32 %v1253, %v1452
    %v1454 = vpop.f32.mrf.mxu0
    %1455 = vmatprep.mubr.f32.mxu0 0.0
    %v1456 = vand.u32 %v799, 4294901760
    %v1457 = vsub.f32 %v799, %v1456
    %1458 = vmatmul.mubr.f32.gmra.mxu0 %v1457
    %v1459 = vpop.f32.mrf.mxu0
    %v1460 = vadd.f32 %v1259, %v1459
    %v1461 = vpop.f32.mrf.mxu0
    %1462 = vmatprep.mubr.f32.mxu0 0.0
    %v1463 = vand.u32 %v802, 4294901760
    %v1464 = vsub.f32 %v802, %v1463
    %1465 = vmatmul.mubr.f32.gmra.mxu0 %v1464
    %v1466 = vpop.f32.mrf.mxu0
    %v1467 = vadd.f32 %v1265, %v1466
    %v1468 = vpop.f32.mrf.mxu0
    %1469 = vmatprep.mubr.f32.mxu0 0.0
    %v1470 = vand.u32 %v805, 4294901760
    %v1471 = vsub.f32 %v805, %v1470
    %1472 = vmatmul.mubr.f32.gmra.mxu0 %v1471
    %v1473 = vpop.f32.mrf.mxu0
    %v1474 = vadd.f32 %v1271, %v1473
    %v1475 = vpop.f32.mrf.mxu0
    %1476 = vdwg.mxu0
    %1477 = vmatprep.subr.mxu0 0.0
    %1478 = vmatpush1.msra.mxu0 0.0
    %1479 = vmatprep.subr.mxu0 0.0
    %1480 = vmatpush1.msra.mxu0 0.0
    %1481 = vmatprep.subr.mxu0 0.0
    %1482 = vmatpush1.msra.mxu0 0.0
    %1483 = vmatprep.subr.mxu0 0.0
    %v1484 = vand.u32 %v808, 4294901760
    %1485 = vmatpush1.msra.mxu0 %v1484
    %1486 = vmatprep.subr.mxu0 0.0
    %v1487 = vand.u32 %v623, 4294901760
    %1488 = vmatpush1.msra.mxu0 %v1487
    %1489 = vmatprep.subr.mxu0 0.0
    %v1490 = vand.u32 %v622, 4294901760
    %1491 = vmatpush1.msra.mxu0 %v1490
    %1492 = vmatprep.subr.mxu0 0.0
    %v1493 = vand.u32 %v621, 4294901760
    %1494 = vmatpush1.msra.mxu0 %v1493
    %1495 = vmatprep.subr.mxu0 0.0
    %v1496 = vand.u32 %v620, 4294901760
    %1497 = vmatpush1.msra.mxu0 %v1496
    %1498 = vmatprep.subr.mxu0 0.0
    %v1499 = vand.u32 %v619, 4294901760
    %1500 = vmatpush1.msra.mxu0 %v1499
    %1501 = vmatprep.subr.mxu0 0.0
    %v1502 = vand.u32 %v618, 4294901760
    %1503 = vmatpush1.msra.mxu0 %v1502
    %1504 = vmatprep.subr.mxu0 0.0
    %v1505 = vand.u32 %v739, 4294901760
    %1506 = vmatpush1.msra.mxu0 %v1505
    %1507 = vmatprep.subr.mxu0 0.0
    %v1508 = vand.u32 %v734, 4294901760
    %1509 = vmatpush1.msra.mxu0 %v1508
    %1510 = vmatprep.subr.mxu0 0.0
    %v1511 = vand.u32 %v729, 4294901760
    %1512 = vmatpush1.msra.mxu0 %v1511
    %1513 = vmatprep.subr.mxu0 0.0
    %v1514 = vand.u32 %v724, 4294901760
    %1515 = vmatpush1.msra.mxu0 %v1514
    %1516 = vmatprep.subr.mxu0 0.0
    %v1517 = vand.u32 %v719, 4294901760
    %1518 = vmatpush1.msra.mxu0 %v1517
    %1519 = vmatprep.subr.mxu0 0.0
    %v1520 = vand.u32 %v714, 4294901760
    %1521 = vmatpush1.msra.mxu0 %v1520
    %1522 = vmatprep.subr.mxu0 0.0
    %1523 = vmatpush2.msra.mxu0 0.0
    %1524 = vmatprep.subr.mxu0 0.0
    %1525 = vmatpush2.msra.mxu0 0.0
    %1526 = vmatprep.subr.mxu0 0.0
    %1527 = vmatpush2.msra.mxu0 0.0
    %1528 = vmatprep.subr.mxu0 0.0
    %1529 = vmatpush2.msra.mxu0 0.0
    %1530 = vmatprep.subr.mxu0 0.0
    %1531 = vmatpush2.msra.mxu0 0.0
    %1532 = vmatprep.subr.mxu0 0.0
    %1533 = vmatpush2.msra.mxu0 0.0
    %1534 = vmatprep.subr.mxu0 0.0
    %1535 = vmatpush2.msra.mxu0 0.0
    %1536 = vmatprep.subr.mxu0 0.0
    %1537 = vmatpush2.msra.mxu0 0.0
    %1538 = vmatprep.subr.mxu0 0.0
    %1539 = vmatpush2.msra.mxu0 0.0
    %1540 = vmatprep.subr.mxu0 0.0
    %1541 = vmatpush2.msra.mxu0 0.0
    %1542 = vmatprep.subr.mxu0 0.0
    %1543 = vmatpush2.msra.mxu0 0.0
    %1544 = vmatprep.subr.mxu0 0.0
    %1545 = vmatpush2.msra.mxu0 0.0
    %1546 = vmatprep.subr.mxu0 0.0
    %1547 = vmatpush2.msra.mxu0 0.0
    %1548 = vmatprep.subr.mxu0 0.0
    %1549 = vmatpush2.msra.mxu0 0.0
    %1550 = vmatprep.subr.mxu0 0.0
    %1551 = vmatpush2.msra.mxu0 0.0
    %1552 = vmatprep.subr.mxu0 0.0
    %1553 = vmatpush2.msra.mxu0 0.0
    %1554 = vmatprep.mubr.f32.mxu0 0.0
    %v1555 = vand.u32 %v760, 4294901760
    %v1556 = vsub.f32 %v760, %v1555
    %v1557 = vand.u32 %v1556, 4294901760
    %1558 = vmatmul.mubr.f32.gmra.mxu0 %v1557
    %v1559 = vpop.f32.mrf.mxu0
    %v1560 = vadd.f32 %v1369, %v1559
    %v1561 = vpop.f32.mrf.mxu0
    %1562 = vmatprep.mubr.f32.mxu0 0.0
    %v1563 = vand.u32 %v763, 4294901760
    %v1564 = vsub.f32 %v763, %v1563
    %v1565 = vand.u32 %v1564, 4294901760
    %1566 = vmatmul.mubr.f32.gmra.mxu0 %v1565
    %v1567 = vpop.f32.mrf.mxu0
    %v1568 = vadd.f32 %v1376, %v1567
    %v1569 = vpop.f32.mrf.mxu0
    %1570 = vmatprep.mubr.f32.mxu0 0.0
    %v1571 = vand.u32 %v766, 4294901760
    %v1572 = vsub.f32 %v766, %v1571
    %v1573 = vand.u32 %v1572, 4294901760
    %1574 = vmatmul.mubr.f32.gmra.mxu0 %v1573
    %v1575 = vpop.f32.mrf.mxu0
    %v1576 = vadd.f32 %v1383, %v1575
    %v1577 = vpop.f32.mrf.mxu0
    %1578 = vmatprep.mubr.f32.mxu0 0.0
    %v1579 = vand.u32 %v769, 4294901760
    %v1580 = vsub.f32 %v769, %v1579
    %v1581 = vand.u32 %v1580, 4294901760
    %1582 = vmatmul.mubr.f32.gmra.mxu0 %v1581
    %v1583 = vpop.f32.mrf.mxu0
    %v1584 = vadd.f32 %v1390, %v1583
    %v1585 = vpop.f32.mrf.mxu0
    %1586 = vmatprep.mubr.f32.mxu0 0.0
    %v1587 = vand.u32 %v772, 4294901760
    %v1588 = vsub.f32 %v772, %v1587
    %v1589 = vand.u32 %v1588, 4294901760
    %1590 = vmatmul.mubr.f32.gmra.mxu0 %v1589
    %v1591 = vpop.f32.mrf.mxu0
    %v1592 = vadd.f32 %v1397, %v1591
    %v1593 = vpop.f32.mrf.mxu0
    %1594 = vmatprep.mubr.f32.mxu0 0.0
    %v1595 = vand.u32 %v775, 4294901760
    %v1596 = vsub.f32 %v775, %v1595
    %v1597 = vand.u32 %v1596, 4294901760
    %1598 = vmatmul.mubr.f32.gmra.mxu0 %v1597
    %v1599 = vpop.f32.mrf.mxu0
    %v1600 = vadd.f32 %v1404, %v1599
    %v1601 = vpop.f32.mrf.mxu0
    %1602 = vmatprep.mubr.f32.mxu0 0.0
    %v1603 = vand.u32 %v778, 4294901760
    %v1604 = vsub.f32 %v778, %v1603
    %v1605 = vand.u32 %v1604, 4294901760
    %1606 = vmatmul.mubr.f32.gmra.mxu0 %v1605
    %v1607 = vpop.f32.mrf.mxu0
    %v1608 = vadd.f32 %v1411, %v1607
    %v1609 = vpop.f32.mrf.mxu0
    %1610 = vmatprep.mubr.f32.mxu0 0.0
    %v1611 = vand.u32 %v781, 4294901760
    %v1612 = vsub.f32 %v781, %v1611
    %v1613 = vand.u32 %v1612, 4294901760
    %1614 = vmatmul.mubr.f32.gmra.mxu0 %v1613
    %v1615 = vpop.f32.mrf.mxu0
    %v1616 = vadd.f32 %v1418, %v1615
    %v1617 = vpop.f32.mrf.mxu0
    %1618 = vmatprep.mubr.f32.mxu0 0.0
    %v1619 = vand.u32 %v784, 4294901760
    %v1620 = vsub.f32 %v784, %v1619
    %v1621 = vand.u32 %v1620, 4294901760
    %1622 = vmatmul.mubr.f32.gmra.mxu0 %v1621
    %v1623 = vpop.f32.mrf.mxu0
    %v1624 = vadd.f32 %v1425, %v1623
    %v1625 = vpop.f32.mrf.mxu0
    %1626 = vmatprep.mubr.f32.mxu0 0.0
    %v1627 = vand.u32 %v787, 4294901760
    %v1628 = vsub.f32 %v787, %v1627
    %v1629 = vand.u32 %v1628, 4294901760
    %1630 = vmatmul.mubr.f32.gmra.mxu0 %v1629
    %v1631 = vpop.f32.mrf.mxu0
    %v1632 = vadd.f32 %v1432, %v1631
    %v1633 = vpop.f32.mrf.mxu0
    %1634 = vmatprep.mubr.f32.mxu0 0.0
    %v1635 = vand.u32 %v790, 4294901760
    %v1636 = vsub.f32 %v790, %v1635
    %v1637 = vand.u32 %v1636, 4294901760
    %1638 = vmatmul.mubr.f32.gmra.mxu0 %v1637
    %v1639 = vpop.f32.mrf.mxu0
    %v1640 = vadd.f32 %v1439, %v1639
    %v1641 = vpop.f32.mrf.mxu0
    %1642 = vmatprep.mubr.f32.mxu0 0.0
    %v1643 = vand.u32 %v793, 4294901760
    %v1644 = vsub.f32 %v793, %v1643
    %v1645 = vand.u32 %v1644, 4294901760
    %1646 = vmatmul.mubr.f32.gmra.mxu0 %v1645
    %v1647 = vpop.f32.mrf.mxu0
    %v1648 = vadd.f32 %v1446, %v1647
    %v1649 = vpop.f32.mrf.mxu0
    %1650 = vmatprep.mubr.f32.mxu0 0.0
    %v1651 = vand.u32 %v796, 4294901760
    %v1652 = vsub.f32 %v796, %v1651
    %v1653 = vand.u32 %v1652, 4294901760
    %1654 = vmatmul.mubr.f32.gmra.mxu0 %v1653
    %v1655 = vpop.f32.mrf.mxu0
    %v1656 = vadd.f32 %v1453, %v1655
    %v1657 = vpop.f32.mrf.mxu0
    %1658 = vmatprep.mubr.f32.mxu0 0.0
    %v1659 = vand.u32 %v799, 4294901760
    %v1660 = vsub.f32 %v799, %v1659
    %v1661 = vand.u32 %v1660, 4294901760
    %1662 = vmatmul.mubr.f32.gmra.mxu0 %v1661
    %v1663 = vpop.f32.mrf.mxu0
    %v1664 = vadd.f32 %v1460, %v1663
    %v1665 = vpop.f32.mrf.mxu0
    %1666 = vmatprep.mubr.f32.mxu0 0.0
    %v1667 = vand.u32 %v802, 4294901760
    %v1668 = vsub.f32 %v802, %v1667
    %v1669 = vand.u32 %v1668, 4294901760
    %1670 = vmatmul.mubr.f32.gmra.mxu0 %v1669
    %v1671 = vpop.f32.mrf.mxu0
    %v1672 = vadd.f32 %v1467, %v1671
    %v1673 = vpop.f32.mrf.mxu0
    %1674 = vmatprep.mubr.f32.mxu0 0.0
    %v1675 = vand.u32 %v805, 4294901760
    %v1676 = vsub.f32 %v805, %v1675
    %v1677 = vand.u32 %v1676, 4294901760
    %1678 = vmatmul.mubr.f32.gmra.mxu0 %v1677
    %v1679 = vpop.f32.mrf.mxu0
    %v1680 = vadd.f32 %v1474, %v1679
    %v1681 = vpop.f32.mrf.mxu0
    %1682 = vdwg.mxu0
    %1683 = vmatprep.subr.mxu0 0.0
    %1684 = vmatpush1.msra.mxu0 0.0
    %1685 = vmatprep.subr.mxu0 0.0
    %1686 = vmatpush1.msra.mxu0 0.0
    %1687 = vmatprep.subr.mxu0 0.0
    %1688 = vmatpush1.msra.mxu0 0.0
    %1689 = vmatprep.subr.mxu0 0.0
    %v1690 = vand.u32 %v808, 4294901760
    %v1691 = vsub.f32 %v808, %v1690
    %v1692 = vand.u32 %v1691, 4294901760
    %1693 = vmatpush1.msra.mxu0 %v1692
    %1694 = vmatprep.subr.mxu0 0.0
    %v1695 = vand.u32 %v623, 4294901760
    %v1696 = vsub.f32 %v623, %v1695
    %v1697 = vand.u32 %v1696, 4294901760
    %1698 = vmatpush1.msra.mxu0 %v1697
    %1699 = vmatprep.subr.mxu0 0.0
    %v1700 = vand.u32 %v622, 4294901760
    %v1701 = vsub.f32 %v622, %v1700
    %v1702 = vand.u32 %v1701, 4294901760
    %1703 = vmatpush1.msra.mxu0 %v1702
    %1704 = vmatprep.subr.mxu0 0.0
    %v1705 = vand.u32 %v621, 4294901760
    %v1706 = vsub.f32 %v621, %v1705
    %v1707 = vand.u32 %v1706, 4294901760
    %1708 = vmatpush1.msra.mxu0 %v1707
    %1709 = vmatprep.subr.mxu0 0.0
    %v1710 = vand.u32 %v620, 4294901760
    %v1711 = vsub.f32 %v620, %v1710
    %v1712 = vand.u32 %v1711, 4294901760
    %1713 = vmatpush1.msra.mxu0 %v1712
    %1714 = vmatprep.subr.mxu0 0.0
    %v1715 = vand.u32 %v619, 4294901760
    %v1716 = vsub.f32 %v619, %v1715
    %v1717 = vand.u32 %v1716, 4294901760
    %1718 = vmatpush1.msra.mxu0 %v1717
    %1719 = vmatprep.subr.mxu0 0.0
    %v1720 = vand.u32 %v618, 4294901760
    %v1721 = vsub.f32 %v618, %v1720
    %v1722 = vand.u32 %v1721, 4294901760
    %1723 = vmatpush1.msra.mxu0 %v1722
    %1724 = vmatprep.subr.mxu0 0.0
    %v1725 = vand.u32 %v739, 4294901760
    %v1726 = vsub.f32 %v739, %v1725
    %v1727 = vand.u32 %v1726, 4294901760
    %1728 = vmatpush1.msra.mxu0 %v1727
    %1729 = vmatprep.subr.mxu0 0.0
    %v1730 = vand.u32 %v734, 4294901760
    %v1731 = vsub.f32 %v734, %v1730
    %v1732 = vand.u32 %v1731, 4294901760
    %1733 = vmatpush1.msra.mxu0 %v1732
    %1734 = vmatprep.subr.mxu0 0.0
    %v1735 = vand.u32 %v729, 4294901760
    %v1736 = vsub.f32 %v729, %v1735
    %v1737 = vand.u32 %v1736, 4294901760
    %1738 = vmatpush1.msra.mxu0 %v1737
    %1739 = vmatprep.subr.mxu0 0.0
    %v1740 = vand.u32 %v724, 4294901760
    %v1741 = vsub.f32 %v724, %v1740
    %v1742 = vand.u32 %v1741, 4294901760
    %1743 = vmatpush1.msra.mxu0 %v1742
    %1744 = vmatprep.subr.mxu0 0.0
    %v1745 = vand.u32 %v719, 4294901760
    %v1746 = vsub.f32 %v719, %v1745
    %v1747 = vand.u32 %v1746, 4294901760
    %1748 = vmatpush1.msra.mxu0 %v1747
    %1749 = vmatprep.subr.mxu0 0.0
    %v1750 = vand.u32 %v714, 4294901760
    %v1751 = vsub.f32 %v714, %v1750
    %v1752 = vand.u32 %v1751, 4294901760
    %1753 = vmatpush1.msra.mxu0 %v1752
    %1754 = vmatprep.subr.mxu0 0.0
    %1755 = vmatpush2.msra.mxu0 0.0
    %1756 = vmatprep.subr.mxu0 0.0
    %1757 = vmatpush2.msra.mxu0 0.0
    %1758 = vmatprep.subr.mxu0 0.0
    %1759 = vmatpush2.msra.mxu0 0.0
    %1760 = vmatprep.subr.mxu0 0.0
    %1761 = vmatpush2.msra.mxu0 0.0
    %1762 = vmatprep.subr.mxu0 0.0
    %1763 = vmatpush2.msra.mxu0 0.0
    %1764 = vmatprep.subr.mxu0 0.0
    %1765 = vmatpush2.msra.mxu0 0.0
    %1766 = vmatprep.subr.mxu0 0.0
    %1767 = vmatpush2.msra.mxu0 0.0
    %1768 = vmatprep.subr.mxu0 0.0
    %1769 = vmatpush2.msra.mxu0 0.0
    %1770 = vmatprep.subr.mxu0 0.0
    %1771 = vmatpush2.msra.mxu0 0.0
    %1772 = vmatprep.subr.mxu0 0.0
    %1773 = vmatpush2.msra.mxu0 0.0
    %1774 = vmatprep.subr.mxu0 0.0
    %1775 = vmatpush2.msra.mxu0 0.0
    %1776 = vmatprep.subr.mxu0 0.0
    %1777 = vmatpush2.msra.mxu0 0.0
    %1778 = vmatprep.subr.mxu0 0.0
    %1779 = vmatpush2.msra.mxu0 0.0
    %1780 = vmatprep.subr.mxu0 0.0
    %1781 = vmatpush2.msra.mxu0 0.0
    %1782 = vmatprep.subr.mxu0 0.0
    %1783 = vmatpush2.msra.mxu0 0.0
    %1784 = vmatprep.subr.mxu0 0.0
    %1785 = vmatpush2.msra.mxu0 0.0
    %1786 = vmatprep.mubr.f32.mxu0 0.0
    %v1787 = vand.u32 %v760, 4294901760
    %1788 = vmatmul.mubr.f32.gmra.mxu0 %v1787
    %v1789 = vpop.f32.mrf.mxu0
    %v1790 = vadd.f32 %v1560, %v1789
    %v1791 = vpop.f32.mrf.mxu0
    %1792 = vmatprep.mubr.f32.mxu0 0.0
    %v1793 = vand.u32 %v763, 4294901760
    %1794 = vmatmul.mubr.f32.gmra.mxu0 %v1793
    %v1795 = vpop.f32.mrf.mxu0
    %v1796 = vadd.f32 %v1568, %v1795
    %v1797 = vpop.f32.mrf.mxu0
    %1798 = vmatprep.mubr.f32.mxu0 0.0
    %v1799 = vand.u32 %v766, 4294901760
    %1800 = vmatmul.mubr.f32.gmra.mxu0 %v1799
    %v1801 = vpop.f32.mrf.mxu0
    %v1802 = vadd.f32 %v1576, %v1801
    %v1803 = vpop.f32.mrf.mxu0
    %1804 = vmatprep.mubr.f32.mxu0 0.0
    %v1805 = vand.u32 %v769, 4294901760
    %1806 = vmatmul.mubr.f32.gmra.mxu0 %v1805
    %v1807 = vpop.f32.mrf.mxu0
    %v1808 = vadd.f32 %v1584, %v1807
    %v1809 = vpop.f32.mrf.mxu0
    %1810 = vmatprep.mubr.f32.mxu0 0.0
    %v1811 = vand.u32 %v772, 4294901760
    %1812 = vmatmul.mubr.f32.gmra.mxu0 %v1811
    %v1813 = vpop.f32.mrf.mxu0
    %v1814 = vadd.f32 %v1592, %v1813
    %v1815 = vpop.f32.mrf.mxu0
    %1816 = vmatprep.mubr.f32.mxu0 0.0
    %v1817 = vand.u32 %v775, 4294901760
    %1818 = vmatmul.mubr.f32.gmra.mxu0 %v1817
    %v1819 = vpop.f32.mrf.mxu0
    %v1820 = vadd.f32 %v1600, %v1819
    %v1821 = vpop.f32.mrf.mxu0
    %1822 = vmatprep.mubr.f32.mxu0 0.0
    %v1823 = vand.u32 %v778, 4294901760
    %1824 = vmatmul.mubr.f32.gmra.mxu0 %v1823
    %v1825 = vpop.f32.mrf.mxu0
    %v1826 = vadd.f32 %v1608, %v1825
    %v1827 = vpop.f32.mrf.mxu0
    %1828 = vmatprep.mubr.f32.mxu0 0.0
    %v1829 = vand.u32 %v781, 4294901760
    %1830 = vmatmul.mubr.f32.gmra.mxu0 %v1829
    %v1831 = vpop.f32.mrf.mxu0
    %v1832 = vadd.f32 %v1616, %v1831
    %v1833 = vpop.f32.mrf.mxu0
    %1834 = vmatprep.mubr.f32.mxu0 0.0
    %v1835 = vand.u32 %v784, 4294901760
    %1836 = vmatmul.mubr.f32.gmra.mxu0 %v1835
    %v1837 = vpop.f32.mrf.mxu0
    %v1838 = vadd.f32 %v1624, %v1837
    %v1839 = vpop.f32.mrf.mxu0
    %1840 = vmatprep.mubr.f32.mxu0 0.0
    %v1841 = vand.u32 %v787, 4294901760
    %1842 = vmatmul.mubr.f32.gmra.mxu0 %v1841
    %v1843 = vpop.f32.mrf.mxu0
    %v1844 = vadd.f32 %v1632, %v1843
    %v1845 = vpop.f32.mrf.mxu0
    %1846 = vmatprep.mubr.f32.mxu0 0.0
    %v1847 = vand.u32 %v790, 4294901760
    %1848 = vmatmul.mubr.f32.gmra.mxu0 %v1847
    %v1849 = vpop.f32.mrf.mxu0
    %v1850 = vadd.f32 %v1640, %v1849
    %v1851 = vpop.f32.mrf.mxu0
    %1852 = vmatprep.mubr.f32.mxu0 0.0
    %v1853 = vand.u32 %v793, 4294901760
    %1854 = vmatmul.mubr.f32.gmra.mxu0 %v1853
    %v1855 = vpop.f32.mrf.mxu0
    %v1856 = vadd.f32 %v1648, %v1855
    %v1857 = vpop.f32.mrf.mxu0
    %1858 = vmatprep.mubr.f32.mxu0 0.0
    %v1859 = vand.u32 %v796, 4294901760
    %1860 = vmatmul.mubr.f32.gmra.mxu0 %v1859
    %v1861 = vpop.f32.mrf.mxu0
    %v1862 = vadd.f32 %v1656, %v1861
    %v1863 = vpop.f32.mrf.mxu0
    %1864 = vmatprep.mubr.f32.mxu0 0.0
    %v1865 = vand.u32 %v799, 4294901760
    %1866 = vmatmul.mubr.f32.gmra.mxu0 %v1865
    %v1867 = vpop.f32.mrf.mxu0
    %v1868 = vadd.f32 %v1664, %v1867
    %v1869 = vpop.f32.mrf.mxu0
    %1870 = vmatprep.mubr.f32.mxu0 0.0
    %v1871 = vand.u32 %v802, 4294901760
    %1872 = vmatmul.mubr.f32.gmra.mxu0 %v1871
    %v1873 = vpop.f32.mrf.mxu0
    %v1874 = vadd.f32 %v1672, %v1873
    %v1875 = vpop.f32.mrf.mxu0
    %1876 = vmatprep.mubr.f32.mxu0 0.0
    %v1877 = vand.u32 %v805, 4294901760
    %1878 = vmatmul.mubr.f32.gmra.mxu0 %v1877
    %v1879 = vpop.f32.mrf.mxu0
    %v1880 = vadd.f32 %v1680, %v1879
    %v1881 = vpop.f32.mrf.mxu0
    %1882 = vdwg.mxu0
    %1883 = vmatprep.subr.mxu0 0.0
    %1884 = vmatpush1.msra.mxu0 0.0
    %1885 = vmatprep.subr.mxu0 0.0
    %1886 = vmatpush1.msra.mxu0 0.0
    %1887 = vmatprep.subr.mxu0 0.0
    %1888 = vmatpush1.msra.mxu0 0.0
    %1889 = vmatprep.subr.mxu0 0.0
    %v1890 = vand.u32 %v808, 4294901760
    %1891 = vmatpush1.msra.mxu0 %v1890
    %1892 = vmatprep.subr.mxu0 0.0
    %v1893 = vand.u32 %v623, 4294901760
    %1894 = vmatpush1.msra.mxu0 %v1893
    %1895 = vmatprep.subr.mxu0 0.0
    %v1896 = vand.u32 %v622, 4294901760
    %1897 = vmatpush1.msra.mxu0 %v1896
    %1898 = vmatprep.subr.mxu0 0.0
    %v1899 = vand.u32 %v621, 4294901760
    %1900 = vmatpush1.msra.mxu0 %v1899
    %1901 = vmatprep.subr.mxu0 0.0
    %v1902 = vand.u32 %v620, 4294901760
    %1903 = vmatpush1.msra.mxu0 %v1902
    %1904 = vmatprep.subr.mxu0 0.0
    %v1905 = vand.u32 %v619, 4294901760
    %1906 = vmatpush1.msra.mxu0 %v1905
    %1907 = vmatprep.subr.mxu0 0.0
    %v1908 = vand.u32 %v618, 4294901760
    %1909 = vmatpush1.msra.mxu0 %v1908
    %1910 = vmatprep.subr.mxu0 0.0
    %v1911 = vand.u32 %v739, 4294901760
    %1912 = vmatpush1.msra.mxu0 %v1911
    %1913 = vmatprep.subr.mxu0 0.0
    %v1914 = vand.u32 %v734, 4294901760
    %1915 = vmatpush1.msra.mxu0 %v1914
    %1916 = vmatprep.subr.mxu0 0.0
    %v1917 = vand.u32 %v729, 4294901760
    %1918 = vmatpush1.msra.mxu0 %v1917
    %1919 = vmatprep.subr.mxu0 0.0
    %v1920 = vand.u32 %v724, 4294901760
    %1921 = vmatpush1.msra.mxu0 %v1920
    %1922 = vmatprep.subr.mxu0 0.0
    %v1923 = vand.u32 %v719, 4294901760
    %1924 = vmatpush1.msra.mxu0 %v1923
    %1925 = vmatprep.subr.mxu0 0.0
    %v1926 = vand.u32 %v714, 4294901760
    %1927 = vmatpush1.msra.mxu0 %v1926
    %1928 = vmatprep.subr.mxu0 0.0
    %1929 = vmatpush2.msra.mxu0 0.0
    %1930 = vmatprep.subr.mxu0 0.0
    %1931 = vmatpush2.msra.mxu0 0.0
    %1932 = vmatprep.subr.mxu0 0.0
    %1933 = vmatpush2.msra.mxu0 0.0
    %1934 = vmatprep.subr.mxu0 0.0
    %1935 = vmatpush2.msra.mxu0 0.0
    %1936 = vmatprep.subr.mxu0 0.0
    %1937 = vmatpush2.msra.mxu0 0.0
    %1938 = vmatprep.subr.mxu0 0.0
    %1939 = vmatpush2.msra.mxu0 0.0
    %1940 = vmatprep.subr.mxu0 0.0
    %1941 = vmatpush2.msra.mxu0 0.0
    %1942 = vmatprep.subr.mxu0 0.0
    %1943 = vmatpush2.msra.mxu0 0.0
    %1944 = vmatprep.subr.mxu0 0.0
    %1945 = vmatpush2.msra.mxu0 0.0
    %1946 = vmatprep.subr.mxu0 0.0
    %1947 = vmatpush2.msra.mxu0 0.0
    %1948 = vmatprep.subr.mxu0 0.0
    %1949 = vmatpush2.msra.mxu0 0.0
    %1950 = vmatprep.subr.mxu0 0.0
    %1951 = vmatpush2.msra.mxu0 0.0
    %1952 = vmatprep.subr.mxu0 0.0
    %1953 = vmatpush2.msra.mxu0 0.0
    %1954 = vmatprep.subr.mxu0 0.0
    %1955 = vmatpush2.msra.mxu0 0.0
    %1956 = vmatprep.subr.mxu0 0.0
    %1957 = vmatpush2.msra.mxu0 0.0
    %1958 = vmatprep.subr.mxu0 0.0
    %1959 = vmatpush2.msra.mxu0 0.0
    %1960 = vmatprep.mubr.f32.mxu0 0.0
    %v1961 = vand.u32 %v760, 4294901760
    %1962 = vmatmul.mubr.f32.gmra.mxu0 %v1961
    %v1963 = vpop.f32.mrf.mxu0
    %v1964 = vadd.f32 %v1790, %v1963
    %v1965 = vpop.f32.mrf.mxu0
    %1966 = vmatprep.mubr.f32.mxu0 0.0
    %v1967 = vand.u32 %v763, 4294901760
    %1968 = vmatmul.mubr.f32.gmra.mxu0 %v1967
    %v1969 = vpop.f32.mrf.mxu0
    %v1970 = vadd.f32 %v1796, %v1969
    %v1971 = vpop.f32.mrf.mxu0
    %1972 = vmatprep.mubr.f32.mxu0 0.0
    %v1973 = vand.u32 %v766, 4294901760
    %1974 = vmatmul.mubr.f32.gmra.mxu0 %v1973
    %v1975 = vpop.f32.mrf.mxu0
    %v1976 = vadd.f32 %v1802, %v1975
    %v1977 = vpop.f32.mrf.mxu0
    %1978 = vmatprep.mubr.f32.mxu0 0.0
    %v1979 = vand.u32 %v769, 4294901760
    %1980 = vmatmul.mubr.f32.gmra.mxu0 %v1979
    %v1981 = vpop.f32.mrf.mxu0
    %v1982 = vadd.f32 %v1808, %v1981
    %v1983 = vpop.f32.mrf.mxu0
    %1984 = vmatprep.mubr.f32.mxu0 0.0
    %v1985 = vand.u32 %v772, 4294901760
    %1986 = vmatmul.mubr.f32.gmra.mxu0 %v1985
    %v1987 = vpop.f32.mrf.mxu0
    %v1988 = vadd.f32 %v1814, %v1987
    %v1989 = vpop.f32.mrf.mxu0
    %1990 = vmatprep.mubr.f32.mxu0 0.0
    %v1991 = vand.u32 %v775, 4294901760
    %1992 = vmatmul.mubr.f32.gmra.mxu0 %v1991
    %v1993 = vpop.f32.mrf.mxu0
    %v1994 = vadd.f32 %v1820, %v1993
    %v1995 = vpop.f32.mrf.mxu0
    %1996 = vmatprep.mubr.f32.mxu0 0.0
    %v1997 = vand.u32 %v778, 4294901760
    %1998 = vmatmul.mubr.f32.gmra.mxu0 %v1997
    %v1999 = vpop.f32.mrf.mxu0
    %v2000 = vadd.f32 %v1826, %v1999
    %v2001 = vpop.f32.mrf.mxu0
    %2002 = vmatprep.mubr.f32.mxu0 0.0
    %v2003 = vand.u32 %v781, 4294901760
    %2004 = vmatmul.mubr.f32.gmra.mxu0 %v2003
    %v2005 = vpop.f32.mrf.mxu0
    %v2006 = vadd.f32 %v1832, %v2005
    %v2007 = vpop.f32.mrf.mxu0
    %2008 = vmatprep.mubr.f32.mxu0 0.0
    %v2009 = vand.u32 %v784, 4294901760
    %2010 = vmatmul.mubr.f32.gmra.mxu0 %v2009
    %v2011 = vpop.f32.mrf.mxu0
    %v2012 = vadd.f32 %v1838, %v2011
    %v2013 = vpop.f32.mrf.mxu0
    %2014 = vmatprep.mubr.f32.mxu0 0.0
    %v2015 = vand.u32 %v787, 4294901760
    %2016 = vmatmul.mubr.f32.gmra.mxu0 %v2015
    %v2017 = vpop.f32.mrf.mxu0
    %v2018 = vadd.f32 %v1844, %v2017
    %v2019 = vpop.f32.mrf.mxu0
    %2020 = vmatprep.mubr.f32.mxu0 0.0
    %v2021 = vand.u32 %v790, 4294901760
    %2022 = vmatmul.mubr.f32.gmra.mxu0 %v2021
    %v2023 = vpop.f32.mrf.mxu0
    %v2024 = vadd.f32 %v1850, %v2023
    %v2025 = vpop.f32.mrf.mxu0
    %2026 = vmatprep.mubr.f32.mxu0 0.0
    %v2027 = vand.u32 %v793, 4294901760
    %2028 = vmatmul.mubr.f32.gmra.mxu0 %v2027
    %v2029 = vpop.f32.mrf.mxu0
    %v2030 = vadd.f32 %v1856, %v2029
    %v2031 = vpop.f32.mrf.mxu0
    %2032 = vmatprep.mubr.f32.mxu0 0.0
    %v2033 = vand.u32 %v796, 4294901760
    %2034 = vmatmul.mubr.f32.gmra.mxu0 %v2033
    %v2035 = vpop.f32.mrf.mxu0
    %v2036 = vadd.f32 %v1862, %v2035
    %v2037 = vpop.f32.mrf.mxu0
    %2038 = vmatprep.mubr.f32.mxu0 0.0
    %v2039 = vand.u32 %v799, 4294901760
    %2040 = vmatmul.mubr.f32.gmra.mxu0 %v2039
    %v2041 = vpop.f32.mrf.mxu0
    %v2042 = vadd.f32 %v1868, %v2041
    %v2043 = vpop.f32.mrf.mxu0
    %2044 = vmatprep.mubr.f32.mxu0 0.0
    %v2045 = vand.u32 %v802, 4294901760
    %2046 = vmatmul.mubr.f32.gmra.mxu0 %v2045
    %v2047 = vpop.f32.mrf.mxu0
    %v2048 = vadd.f32 %v1874, %v2047
    %v2049 = vpop.f32.mrf.mxu0
    %2050 = vmatprep.mubr.f32.mxu0 0.0
    %v2051 = vand.u32 %v805, 4294901760
    %2052 = vmatmul.mubr.f32.gmra.mxu0 %v2051
    %v2053 = vpop.f32.mrf.mxu0
    %v2054 = vadd.f32 %v1880, %v2053
    %v2055 = vpop.f32.mrf.mxu0
    %2056 = vdwg.mxu0
    %v2057 = vmax.f32 %v1964, 0.0
    %v2058 = vmax.f32 %v1970, 0.0
    %v2059 = vmax.f32 %v1976, 0.0
    %v2060 = vmax.f32 %v1982, 0.0
    %v2061 = vmax.f32 %v1988, 0.0
    %v2062 = vmax.f32 %v1994, 0.0
    %v2063 = vmax.f32 %v2000, 0.0
    %v2064 = vmax.f32 %v2006, 0.0
    %v2065 = vmax.f32 %v2012, 0.0
    %v2066 = vmax.f32 %v2018, 0.0
    %v2067 = vmax.f32 %v2024, 0.0
    %v2068 = vmax.f32 %v2030, 0.0
    %v2069 = vmax.f32 %v2036, 0.0
    %v2070 = vmax.f32 %v2042, 0.0
    %v2071 = vmax.f32 %v2048, 0.0
    %v2072 = vmax.f32 %v2054, 0.0
    %2073 = vst.msk [vmem:[%s6] sm:$0xff] %vm418, %v2057
    %2074 = vst.msk [vmem:[%s6 + $0x8] sm:$0xff] %vm418, %v2058
    %2075 = vst.msk [vmem:[%s6 + $0x10] sm:$0xff] %vm418, %v2059
    %2076 = vst.msk [vmem:[%s6 + $0x18] sm:$0xff] %vm418, %v2060
    %2077 = vst.msk [vmem:[%s6 + $0x20] sm:$0xff] %vm418, %v2061
    %2078 = vst.msk [vmem:[%s6 + $0x28] sm:$0xff] %vm418, %v2062
    %2079 = vst.msk [vmem:[%s6 + $0x30] sm:$0xff] %vm418, %v2063
    %2080 = vst.msk [vmem:[%s6 + $0x38] sm:$0xff] %vm418, %v2064
    %2081 = vst.msk [vmem:[%s6 + $0x40] sm:$0xff] %vm418, %v2065
    %2082 = vst.msk [vmem:[%s6 + $0x48] sm:$0xff] %vm418, %v2066
    %2083 = vst.msk [vmem:[%s6 + $0x50] sm:$0xff] %vm418, %v2067
    %2084 = vst.msk [vmem:[%s6 + $0x58] sm:$0xff] %vm418, %v2068
    %2085 = vst.msk [vmem:[%s6 + $0x60] sm:$0xff] %vm418, %v2069
    %2086 = vst.msk [vmem:[%s6 + $0x68] sm:$0xff] %vm418, %v2070
    %2087 = vst.msk [vmem:[%s6 + $0x70] sm:$0xff] %vm418, %v2071
    %2088 = vst.msk [vmem:[%s6 + $0x78] sm:$0xff] %vm418, %v2072
    // Predicated region
    $region30: #{ped_graph_convolution.1} parent=1 // pred_check
      _
    $region31: #{ped_graph_convolution.1} parent=1 // pred_check_branch
      %2090 = sbr.rel (0) target = $region33
    $region32: #{ped_graph_convolution.1} parent=1 // pred_region
      _
    $region33: #{ped_graph_convolution.1} parent=1 // pred_fallthru
      _
    // Predicated region
    $region34: #{ped_graph_convolution.1} parent=1 // pred_check
      _
    $region35: #{ped_graph_convolution.1} parent=1 // pred_check_branch
      %2092 = sbr.rel (0) target = $region37
    $region36: #{ped_graph_convolution.1} parent=1 // pred_region
      _
    $region37: #{ped_graph_convolution.1} parent=1 // pred_fallthru
      _
    %2093 = vsyncpa [#allocation3], 1

</llo_original>
